<compile_context>
chip_gen: v6e
topology: v6e:2x2x1
jax: 0.10.0
libtpu: 0.0.40
codegen_flags: <defaults>
</compile_context>

<pallas_src>
import functools

import jax
import jax.numpy as jnp
from jax.experimental import pallas as pl
from jax.experimental.pallas import tpu as pltpu

IMAGE_SIZE = (1, 28, 28)
IN_FEATURES = 1 * 28 * 28          # 784
K_PAD = 896                        # 7 * 128 : lane-dense layer-1 K dimension
LAYER_DIMS = [IN_FEATURES, 512, 256, 128, 64, 32, 1]
NUM_LAYERS = len(LAYER_DIMS) - 1
MAX_OUT = max(LAYER_DIMS[1:])      # 512 : lane width of the packed const buffer
TARGET_GRID_STEPS = 4              # aim for >= 4 grid steps (megacore + pipelining)
_INV_SQRT2 = 0.7071067811865476


def _round_up(x, m):
    return ((x + m - 1) // m) * m


def _gelu_exact(x):
    # PyTorch nn.GELU() default (approximate='none'): x * 0.5 * (1 + erf(x/sqrt(2)))
    return x * 0.5 * (1.0 + jax.lax.erf(x * jnp.asarray(_INV_SQRT2, x.dtype)))


def _discriminator_kernel(x_ref, w1, w2, w3, w4, w5, c_ref, o_ref):
    """Fused MLP forward for one batch tile.

    x_ref : [TB, 896] bf16   activation tile (pipelined over the batch grid)
    w1..w5: [in, out] bf16   full weight matrices, VMEM-resident across steps
    c_ref : [8, 512]  f32    packed consts:
                               row i (i<5)      : bias of layer i in cols [:out_i]
                               row 5, col 0     : bias of layer 5 (scalar)
                               row 6, cols [:32]: layer-5 weight row (32 -> 1)
    o_ref : [TB, 1]   f32    sigmoid probabilities
    """
    c = c_ref[...]  # [8, 512] f32, single resident buffer

    def dense_gelu(h_bf16, w_ref, layer):
        out_dim = LAYER_DIMS[layer + 1]
        bias = c[layer:layer + 1, :out_dim]            # [1, out_dim], static slice
        # bf16 x bf16 -> f32 accumulation: single MXU pass, precision explicit.
        y = jnp.dot(h_bf16, w_ref[...], preferred_element_type=jnp.float32) + bias
        # tanh-approx GELU: transcendental goes to the EUP slot, not a VALU erf poly.
        return jax.nn.gelu(y, approximate=True)

    h = dense_gelu(x_ref[...], w1, 0)                  # [TB, 512] f32
    h = dense_gelu(h.astype(jnp.bfloat16), w2, 1)      # [TB, 256] f32
    h = dense_gelu(h.astype(jnp.bfloat16), w3, 2)      # [TB, 128] f32
    h = dense_gelu(h.astype(jnp.bfloat16), w4, 3)      # [TB, 64]  f32
    h = dense_gelu(h.astype(jnp.bfloat16), w5, 4)      # [TB, 32]  f32

    # Final 32 -> 1 layer as a VPU multiply + XLU reduction (avoids N=1 MXU push),
    # in full f32.
    w6_row = c[6:7, :LAYER_DIMS[5]]                    # [1, 32]
    b6 = c[5:6, :1]                                    # [1, 1]
    logits = jnp.sum(h * w6_row, axis=-1, keepdims=True) + b6   # [TB, 1] f32
    o_ref[...] = jax.nn.sigmoid(logits).astype(o_ref.dtype)


def init_params(key, dtype=jnp.float32):
    """Deterministic synthetic params. Shapes match nn.Linear(in, out):
    weight stored as [in, out] (transposed vs. torch's [out, in]), bias [1, out]."""
    params = []
    for i in range(NUM_LAYERS):
        fan_in, fan_out = LAYER_DIMS[i], LAYER_DIMS[i + 1]
        key, kw, kb = jax.random.split(key, 3)
        bound = 1.0 / jnp.sqrt(fan_in)
        w = jax.random.uniform(kw, (fan_in, fan_out), dtype, -bound, bound)
        b = jax.random.uniform(kb, (1, fan_out), dtype, -bound, bound)
        params.append((w, b))
    return params


def _pack_consts(params):
    """Pack the 6 biases + the final (32->1) weight row into one [8, 512] f32 buffer."""
    c = jnp.zeros((8, MAX_OUT), jnp.float32)
    for i in range(NUM_LAYERS - 1):                       # biases of layers 0..4
        b = params[i][1].reshape(-1).astype(jnp.float32)
        c = c.at[i, :b.shape[0]].set(b)
    c = c.at[5, 0].set(params[5][1].reshape(-1).astype(jnp.float32)[0])      # bias 5
    c = c.at[6, :LAYER_DIMS[5]].set(params[5][0].reshape(-1).astype(jnp.float32))  # w6
    return c


@functools.partial(jax.jit, static_argnames=("block_batch",))
def discriminator_forward(image, params, *, block_batch=512):
    """image: [B, 1, 28, 28] float32 -> prob: [B, 1] float32."""
    B = image.shape[0]

    # Flatten row-major (== torch .reshape), pad K 784 -> 896 (lane-dense) and the
    # batch to the sublane granularity (multiple of 8).  Both pads fuse with the
    # bf16 cast into a single elementwise pass over x.
    B_pad = _round_up(B, 8)
    x = image.reshape(B, IN_FEATURES)
    x = jnp.pad(x, ((0, B_pad - B), (0, K_PAD - IN_FEATURES))).astype(jnp.bfloat16)

    # bf16 weights (f32 MXU accumulation in-kernel); W1's padded K rows are zero.
    w1 = jnp.pad(params[0][0],
                 ((0, K_PAD - IN_FEATURES), (0, 0))).astype(jnp.bfloat16)
    weights = [w1] + [w.astype(jnp.bfloat16) for (w, _) in params[1:NUM_LAYERS - 1 + 1][:4]]
    # (w2..w5; the final 32->1 weight lives in the packed const buffer)
    consts = _pack_consts(params)

    # Batch tile: multiple of 8, sized so the grid has >= TARGET_GRID_STEPS steps
    # when the batch allows it (megacore sharding on v7x + x double-buffering),
    # capped at block_batch.
    TB = min(block_batch,
             max(8, _round_up(-(-B_pad // TARGET_GRID_STEPS), 8)))
    grid = (pl.cdiv(B_pad, TB),)

    x_spec = pl.BlockSpec((TB, K_PAD), lambda i: (i, 0))
    # Constant index_map -> weights/consts fetched once, stay VMEM-resident.
    w_specs = [pl.BlockSpec(w.shape, lambda i: (0, 0)) for w in weights]
    c_spec = pl.BlockSpec(consts.shape, lambda i: (0, 0))
    # [TB, 1] output -> masked partial stores; accepted (output is tiny: B*4 bytes).
    out_spec = pl.BlockSpec((TB, 1), lambda i: (i, 0))

    out = pl.pallas_call(
        _discriminator_kernel,
        out_shape=jax.ShapeDtypeStruct((B_pad, 1), jnp.float32),
        grid=grid,
        in_specs=[x_spec] + w_specs + [c_spec],
        out_specs=out_spec,
        compiler_params=pltpu.CompilerParams(
            dimension_semantics=("parallel",),   # megacore sharding on v7x
            vmem_limit_bytes=32 << 20,           # > v5e's 16 MiB default scoped
                                                 # limit (intentional), half of
                                                 # v7x's 64 MiB physical VMEM
        ),
    )(x, *weights, consts)

    return out[:B]


def _reference_forward_exact(image, params):
    """Pure-JAX, f32, erf-GELU reference (matches the PyTorch module's math)."""
    x = image.reshape(image.shape[0], -1).astype(jnp.float32)
    for i, (w, b) in enumerate(params):
        x = x @ w + b
        if i < NUM_LAYERS - 1:
            x = _gelu_exact(x)
    return jax.nn.sigmoid(x)


def _reference_forward_matched(image, params):
    """Pure-JAX reference mirroring the kernel's numerics:
    bf16 matmul inputs with f32 accumulation, tanh-approx GELU,
    final 32->1 layer as an f32 reduction."""
    h = image.reshape(image.shape[0], -1).astype(jnp.bfloat16)
    for i in range(NUM_LAYERS - 1):
        w, b = params[i]
        h = jnp.dot(h.astype(jnp.bfloat16), w.astype(jnp.bfloat16),
                    preferred_element_type=jnp.float32) + b.astype(jnp.float32)
        h = jax.nn.gelu(h, approximate=True)
    w6, b6 = params[-1]
    logits = jnp.sum(h * w6.reshape(1, -1).astype(jnp.float32),
                     axis=-1, keepdims=True) + b6.astype(jnp.float32)
    return jax.nn.sigmoid(logits)


if __name__ == "__main__":
    key = jax.random.PRNGKey(0)
    kp, kx1, kx2 = jax.random.split(key, 3)

    params = init_params(kp)

    # Small inference-style batch (single grid step, batch padded 2 -> 8).
    B1 = 2
    image1 = jax.random.normal(kx1, (B1,) + IMAGE_SIZE, dtype=jnp.float32)
    prob1 = jax.block_until_ready(discriminator_forward(image1, params))
    assert prob1.shape == (B1, 1), prob1.shape
    ref1_match = _reference_forward_matched(image1, params)
    ref1_exact = _reference_forward_exact(image1, params)
    # Tight check vs. a numerics-matched reference (same bf16 / tanh-GELU math).
    assert jnp.allclose(prob1, ref1_match, atol=5e-3, rtol=5e-3)
    # Relaxed check vs. the exact f32 / erf-GELU PyTorch-equivalent reference
    # (bf16 matmuls + tanh GELU intentionally trade ~1e-2 fidelity for speed).
    assert jnp.allclose(prob1, ref1_exact, atol=5e-2, rtol=5e-2)

    # Exercise the batch grid (multiple pipelined steps + sublane batch pad)
    # with a small block size so shapes stay tiny.
    B2 = 20
    image2 = jax.random.normal(kx2, (B2,) + IMAGE_SIZE, dtype=jnp.float32)
    prob2 = jax.block_until_ready(
        discriminator_forward(image2, params, block_batch=8))
    assert prob2.shape == (B2, 1), prob2.shape
    ref2_match = _reference_forward_matched(image2, params)
    ref2_exact = _reference_forward_exact(image2, params)
    assert jnp.allclose(prob2, ref2_match, atol=5e-3, rtol=5e-3)
    assert jnp.allclose(prob2, ref2_exact, atol=5e-2, rtol=5e-2)

    print("KERNEL_OK")
</pallas_src>

<mosaic_0001>
module attributes {stable_mosaic.version = 11 : i64} {
  func.func @_discriminator_kernel(%arg0: i32, %arg1: memref<8x896xbf16, #tpu.memory_space<vmem>>, %arg2: memref<896x512xbf16, #tpu.memory_space<vmem>>, %arg3: memref<512x256xbf16, #tpu.memory_space<vmem>>, %arg4: memref<256x128xbf16, #tpu.memory_space<vmem>>, %arg5: memref<128x64xbf16, #tpu.memory_space<vmem>>, %arg6: memref<64x32xbf16, #tpu.memory_space<vmem>>, %arg7: memref<8x512xf32, #tpu.memory_space<vmem>>, %arg8: memref<8x1xf32, #tpu.memory_space<vmem>>) attributes {dimension_semantics = [#tpu.dimension_semantics<parallel>], iteration_bounds = array<i64: 1>, scalar_prefetch = 0 : i64, scratch_operands = 0 : i64, tpu.core_type = #tpu.core_type<tc>, window_params = [{transform_indices = @transform_0, window_bounds = array<i64: 8, 896>}, {pipeline_mode = #tpu.pipeline_mode<synchronous>, transform_indices = @transform_1, window_bounds = array<i64: 896, 512>}, {pipeline_mode = #tpu.pipeline_mode<synchronous>, transform_indices = @transform_2, window_bounds = array<i64: 512, 256>}, {pipeline_mode = #tpu.pipeline_mode<synchronous>, transform_indices = @transform_3, window_bounds = array<i64: 256, 128>}, {pipeline_mode = #tpu.pipeline_mode<synchronous>, transform_indices = @transform_4, window_bounds = array<i64: 128, 64>}, {pipeline_mode = #tpu.pipeline_mode<synchronous>, transform_indices = @transform_5, window_bounds = array<i64: 64, 32>}, {pipeline_mode = #tpu.pipeline_mode<synchronous>, transform_indices = @transform_6, window_bounds = array<i64: 8, 512>}, {transform_indices = @transform_7, window_bounds = array<i64: 8, 1>}]} {
    %c0 = arith.constant 0 : index
    %c0_0 = arith.constant 0 : index
    %0 = vector.load %arg7[%c0, %c0_0] : memref<8x512xf32, #tpu.memory_space<vmem>>, vector<8x512xf32>
    %c0_1 = arith.constant 0 : index
    %c0_2 = arith.constant 0 : index
    %1 = vector.load %arg1[%c0_1, %c0_2] : memref<8x896xbf16, #tpu.memory_space<vmem>>, vector<8x896xbf16>
    %2 = vector.extract_strided_slice %0 {offsets = [0, 0], sizes = [1, 512], strides = [1, 1]} : vector<8x512xf32> to vector<1x512xf32>
    %c0_3 = arith.constant 0 : index
    %c0_4 = arith.constant 0 : index
    %3 = vector.load %arg2[%c0_3, %c0_4] : memref<896x512xbf16, #tpu.memory_space<vmem>>, vector<896x512xbf16>
    %cst = arith.constant dense<0.000000e+00> : vector<8x512xf32>
    %4 = tpu.matmul %1, %3, %cst {dimension_numbers = #tpu.dot_dimension_numbers<[1], [0], [0], [1], [0, 0, 1, 1], [], []>} : vector<8x896xbf16>, vector<896x512xbf16>, vector<8x512xf32> -> vector<8x512xf32>
    %5 = vector.broadcast %2 : vector<1x512xf32> to vector<8x512xf32>
    %6 = arith.addf %4, %5 : vector<8x512xf32>
    %7 = arith.mulf %6, %6 : vector<8x512xf32>
    %8 = arith.mulf %6, %7 : vector<8x512xf32>
    %cst_5 = arith.constant 4.471500e-02 : f32
    %9 = vector.broadcast %cst_5 : f32 to vector<8x512xf32>
    %10 = arith.mulf %9, %8 : vector<8x512xf32>
    %11 = arith.addf %6, %10 : vector<8x512xf32>
    %cst_6 = arith.constant 0.797884583 : f32
    %12 = vector.broadcast %cst_6 : f32 to vector<8x512xf32>
    %13 = arith.mulf %12, %11 : vector<8x512xf32>
    %14 = math.tanh %13 : vector<8x512xf32>
    %cst_7 = arith.constant 1.000000e+00 : f32
    %15 = vector.broadcast %cst_7 : f32 to vector<8x512xf32>
    %16 = arith.addf %15, %14 : vector<8x512xf32>
    %cst_8 = arith.constant 5.000000e-01 : f32
    %17 = vector.broadcast %cst_8 : f32 to vector<8x512xf32>
    %18 = arith.mulf %17, %16 : vector<8x512xf32>
    %19 = arith.mulf %6, %18 : vector<8x512xf32>
    %20 = arith.truncf %19 : vector<8x512xf32> to vector<8x512xbf16>
    %21 = vector.extract_strided_slice %0 {offsets = [1, 0], sizes = [1, 256], strides = [1, 1]} : vector<8x512xf32> to vector<1x256xf32>
    %c0_9 = arith.constant 0 : index
    %c0_10 = arith.constant 0 : index
    %22 = vector.load %arg3[%c0_9, %c0_10] : memref<512x256xbf16, #tpu.memory_space<vmem>>, vector<512x256xbf16>
    %cst_11 = arith.constant dense<0.000000e+00> : vector<8x256xf32>
    %23 = tpu.matmul %20, %22, %cst_11 {dimension_numbers = #tpu.dot_dimension_numbers<[1], [0], [0], [1], [0, 0, 1, 1], [], []>} : vector<8x512xbf16>, vector<512x256xbf16>, vector<8x256xf32> -> vector<8x256xf32>
    %24 = vector.broadcast %21 : vector<1x256xf32> to vector<8x256xf32>
    %25 = arith.addf %23, %24 : vector<8x256xf32>
    %26 = arith.mulf %25, %25 : vector<8x256xf32>
    %27 = arith.mulf %25, %26 : vector<8x256xf32>
    %cst_12 = arith.constant 4.471500e-02 : f32
    %28 = vector.broadcast %cst_12 : f32 to vector<8x256xf32>
    %29 = arith.mulf %28, %27 : vector<8x256xf32>
    %30 = arith.addf %25, %29 : vector<8x256xf32>
    %cst_13 = arith.constant 0.797884583 : f32
    %31 = vector.broadcast %cst_13 : f32 to vector<8x256xf32>
    %32 = arith.mulf %31, %30 : vector<8x256xf32>
    %33 = math.tanh %32 : vector<8x256xf32>
    %cst_14 = arith.constant 1.000000e+00 : f32
    %34 = vector.broadcast %cst_14 : f32 to vector<8x256xf32>
    %35 = arith.addf %34, %33 : vector<8x256xf32>
    %cst_15 = arith.constant 5.000000e-01 : f32
    %36 = vector.broadcast %cst_15 : f32 to vector<8x256xf32>
    %37 = arith.mulf %36, %35 : vector<8x256xf32>
    %38 = arith.mulf %25, %37 : vector<8x256xf32>
    %39 = arith.truncf %38 : vector<8x256xf32> to vector<8x256xbf16>
    %40 = vector.extract_strided_slice %0 {offsets = [2, 0], sizes = [1, 128], strides = [1, 1]} : vector<8x512xf32> to vector<1x128xf32>
    %c0_16 = arith.constant 0 : index
    %c0_17 = arith.constant 0 : index
    %41 = vector.load %arg4[%c0_16, %c0_17] : memref<256x128xbf16, #tpu.memory_space<vmem>>, vector<256x128xbf16>
    %cst_18 = arith.constant dense<0.000000e+00> : vector<8x128xf32>
    %42 = tpu.matmul %39, %41, %cst_18 {dimension_numbers = #tpu.dot_dimension_numbers<[1], [0], [0], [1], [0, 0, 1, 1], [], []>} : vector<8x256xbf16>, vector<256x128xbf16>, vector<8x128xf32> -> vector<8x128xf32>
    %43 = vector.broadcast %40 : vector<1x128xf32> to vector<8x128xf32>
    %44 = arith.addf %42, %43 : vector<8x128xf32>
    %45 = arith.mulf %44, %44 : vector<8x128xf32>
    %46 = arith.mulf %44, %45 : vector<8x128xf32>
    %cst_19 = arith.constant 4.471500e-02 : f32
    %47 = vector.broadcast %cst_19 : f32 to vector<8x128xf32>
    %48 = arith.mulf %47, %46 : vector<8x128xf32>
    %49 = arith.addf %44, %48 : vector<8x128xf32>
    %cst_20 = arith.constant 0.797884583 : f32
    %50 = vector.broadcast %cst_20 : f32 to vector<8x128xf32>
    %51 = arith.mulf %50, %49 : vector<8x128xf32>
    %52 = math.tanh %51 : vector<8x128xf32>
    %cst_21 = arith.constant 1.000000e+00 : f32
    %53 = vector.broadcast %cst_21 : f32 to vector<8x128xf32>
    %54 = arith.addf %53, %52 : vector<8x128xf32>
    %cst_22 = arith.constant 5.000000e-01 : f32
    %55 = vector.broadcast %cst_22 : f32 to vector<8x128xf32>
    %56 = arith.mulf %55, %54 : vector<8x128xf32>
    %57 = arith.mulf %44, %56 : vector<8x128xf32>
    %58 = arith.truncf %57 : vector<8x128xf32> to vector<8x128xbf16>
    %59 = vector.extract_strided_slice %0 {offsets = [3, 0], sizes = [1, 64], strides = [1, 1]} : vector<8x512xf32> to vector<1x64xf32>
    %c0_23 = arith.constant 0 : index
    %c0_24 = arith.constant 0 : index
    %60 = vector.load %arg5[%c0_23, %c0_24] : memref<128x64xbf16, #tpu.memory_space<vmem>>, vector<128x64xbf16>
    %cst_25 = arith.constant dense<0.000000e+00> : vector<8x64xf32>
    %61 = tpu.matmul %58, %60, %cst_25 {dimension_numbers = #tpu.dot_dimension_numbers<[1], [0], [0], [1], [0, 0, 1, 1], [], []>} : vector<8x128xbf16>, vector<128x64xbf16>, vector<8x64xf32> -> vector<8x64xf32>
    %62 = vector.broadcast %59 : vector<1x64xf32> to vector<8x64xf32>
    %63 = arith.addf %61, %62 : vector<8x64xf32>
    %64 = arith.mulf %63, %63 : vector<8x64xf32>
    %65 = arith.mulf %63, %64 : vector<8x64xf32>
    %cst_26 = arith.constant 4.471500e-02 : f32
    %66 = vector.broadcast %cst_26 : f32 to vector<8x64xf32>
    %67 = arith.mulf %66, %65 : vector<8x64xf32>
    %68 = arith.addf %63, %67 : vector<8x64xf32>
    %cst_27 = arith.constant 0.797884583 : f32
    %69 = vector.broadcast %cst_27 : f32 to vector<8x64xf32>
    %70 = arith.mulf %69, %68 : vector<8x64xf32>
    %71 = math.tanh %70 : vector<8x64xf32>
    %cst_28 = arith.constant 1.000000e+00 : f32
    %72 = vector.broadcast %cst_28 : f32 to vector<8x64xf32>
    %73 = arith.addf %72, %71 : vector<8x64xf32>
    %cst_29 = arith.constant 5.000000e-01 : f32
    %74 = vector.broadcast %cst_29 : f32 to vector<8x64xf32>
    %75 = arith.mulf %74, %73 : vector<8x64xf32>
    %76 = arith.mulf %63, %75 : vector<8x64xf32>
    %77 = arith.truncf %76 : vector<8x64xf32> to vector<8x64xbf16>
    %78 = vector.extract_strided_slice %0 {offsets = [4, 0], sizes = [1, 32], strides = [1, 1]} : vector<8x512xf32> to vector<1x32xf32>
    %c0_30 = arith.constant 0 : index
    %c0_31 = arith.constant 0 : index
    %79 = vector.load %arg6[%c0_30, %c0_31] : memref<64x32xbf16, #tpu.memory_space<vmem>>, vector<64x32xbf16>
    %cst_32 = arith.constant dense<0.000000e+00> : vector<8x32xf32>
    %80 = tpu.matmul %77, %79, %cst_32 {dimension_numbers = #tpu.dot_dimension_numbers<[1], [0], [0], [1], [0, 0, 1, 1], [], []>} : vector<8x64xbf16>, vector<64x32xbf16>, vector<8x32xf32> -> vector<8x32xf32>
    %81 = vector.broadcast %78 : vector<1x32xf32> to vector<8x32xf32>
    %82 = arith.addf %80, %81 : vector<8x32xf32>
    %83 = arith.mulf %82, %82 : vector<8x32xf32>
    %84 = arith.mulf %82, %83 : vector<8x32xf32>
    %cst_33 = arith.constant 4.471500e-02 : f32
    %85 = vector.broadcast %cst_33 : f32 to vector<8x32xf32>
    %86 = arith.mulf %85, %84 : vector<8x32xf32>
    %87 = arith.addf %82, %86 : vector<8x32xf32>
    %cst_34 = arith.constant 0.797884583 : f32
    %88 = vector.broadcast %cst_34 : f32 to vector<8x32xf32>
    %89 = arith.mulf %88, %87 : vector<8x32xf32>
    %90 = math.tanh %89 : vector<8x32xf32>
    %cst_35 = arith.constant 1.000000e+00 : f32
    %91 = vector.broadcast %cst_35 : f32 to vector<8x32xf32>
    %92 = arith.addf %91, %90 : vector<8x32xf32>
    %cst_36 = arith.constant 5.000000e-01 : f32
    %93 = vector.broadcast %cst_36 : f32 to vector<8x32xf32>
    %94 = arith.mulf %93, %92 : vector<8x32xf32>
    %95 = arith.mulf %82, %94 : vector<8x32xf32>
    %96 = vector.extract_strided_slice %0 {offsets = [6, 0], sizes = [1, 32], strides = [1, 1]} : vector<8x512xf32> to vector<1x32xf32>
    %97 = vector.extract_strided_slice %0 {offsets = [5, 0], sizes = [1, 1], strides = [1, 1]} : vector<8x512xf32> to vector<1x1xf32>
    %98 = vector.broadcast %96 : vector<1x32xf32> to vector<8x32xf32>
    %99 = arith.mulf %95, %98 : vector<8x32xf32>
    %cst_37 = arith.constant dense<0.000000e+00> : vector<8xf32>
    %100 = vector.multi_reduction <add>, %99, %cst_37 [1] : vector<8x32xf32> to vector<8xf32>
    %101 = vector.shape_cast %100 : vector<8xf32> to vector<8x1xf32>
    %102 = vector.broadcast %97 : vector<1x1xf32> to vector<8x1xf32>
    %103 = arith.addf %101, %102 : vector<8x1xf32>
    %104 = arith.negf %103 : vector<8x1xf32>
    %105 = math.exp %104 : vector<8x1xf32>
    %cst_38 = arith.constant 1.000000e+00 : f32
    %106 = vector.broadcast %cst_38 : f32 to vector<8x1xf32>
    %107 = arith.addf %106, %105 : vector<8x1xf32>
    %108 = arith.divf %106, %107 : vector<8x1xf32>
    %c0_39 = arith.constant 0 : index
    %c0_40 = arith.constant 0 : index
    %109 = vector.load %arg8[%c0_39, %c0_40] : memref<8x1xf32, #tpu.memory_space<vmem>>, vector<8x1xf32>
    tpu.vector_store %arg8[%c0_39, %c0_40], %108 {strides = array<i32>} : memref<8x1xf32, #tpu.memory_space<vmem>>, vector<8x1xf32>,
    return
  }
  func.func @transform_0(%arg0: i32) -> (i32, i32) {
    %c0_i32 = arith.constant 0 : i32
    %c0_i32_0 = arith.constant 0 : i32
    return %arg0, %c0_i32 : i32, i32
  }
  func.func @transform_1(%arg0: i32) -> (i32, i32) {
    %c0_i32 = arith.constant 0 : i32
    %c0_i32_0 = arith.constant 0 : i32
    %c0_i32_1 = arith.constant 0 : i32
    return %c0_i32, %c0_i32_0 : i32, i32
  }
  func.func @transform_2(%arg0: i32) -> (i32, i32) {
    %c0_i32 = arith.constant 0 : i32
    %c0_i32_0 = arith.constant 0 : i32
    %c0_i32_1 = arith.constant 0 : i32
    return %c0_i32, %c0_i32_0 : i32, i32
  }
  func.func @transform_3(%arg0: i32) -> (i32, i32) {
    %c0_i32 = arith.constant 0 : i32
    %c0_i32_0 = arith.constant 0 : i32
    %c0_i32_1 = arith.constant 0 : i32
    return %c0_i32, %c0_i32_0 : i32, i32
  }
  func.func @transform_4(%arg0: i32) -> (i32, i32) {
    %c0_i32 = arith.constant 0 : i32
    %c0_i32_0 = arith.constant 0 : i32
    %c0_i32_1 = arith.constant 0 : i32
    return %c0_i32, %c0_i32_0 : i32, i32
  }
  func.func @transform_5(%arg0: i32) -> (i32, i32) {
    %c0_i32 = arith.constant 0 : i32
    %c0_i32_0 = arith.constant 0 : i32
    %c0_i32_1 = arith.constant 0 : i32
    return %c0_i32, %c0_i32_0 : i32, i32
  }
  func.func @transform_6(%arg0: i32) -> (i32, i32) {
    %c0_i32 = arith.constant 0 : i32
    %c0_i32_0 = arith.constant 0 : i32
    %c0_i32_1 = arith.constant 0 : i32
    return %c0_i32, %c0_i32_0 : i32, i32
  }
  func.func @transform_7(%arg0: i32) -> (i32, i32) {
    %c0_i32 = arith.constant 0 : i32
    %c0_i32_0 = arith.constant 0 : i32
    return %arg0, %c0_i32 : i32, i32
  }
}

</mosaic_0001>

<llo_original>
// kernel: discriminator_forward.1
$region0: #{discriminator_forward.1}
  #allocation0 [shape = 'u32[]', space=smem, size = 0x4, offset = 0x4, fixed_abs, tag = 'smem constant byte address 0x4 - core index']
  #allocation1 [shape = 'u32[144,128]{1,0:T(1,128)}', space=vmem, size = 0x12000, scoped, tag = 'internal scratch']
  %s0 = inlined_call_operand.vmem [shape: bf16[8,896], index: 0, kind: input, shape index: {}]
  %s1 = inlined_call_operand.vmem [shape: bf16[896,512], index: 1, kind: input, shape index: {}]
  %s2 = inlined_call_operand.vmem [shape: bf16[512,256], index: 2, kind: input, shape index: {}]
  %s3 = inlined_call_operand.vmem [shape: bf16[256,128], index: 3, kind: input, shape index: {}]
  %s4 = inlined_call_operand.vmem [shape: bf16[128,64], index: 4, kind: input, shape index: {}]
  %s5 = inlined_call_operand.vmem [shape: bf16[64,32], index: 5, kind: input, shape index: {}]
  %s6 = inlined_call_operand.vmem [shape: f32[8,512], index: 6, kind: input, shape index: {}]
  %s7 = inlined_call_operand.vmem [shape: f32[8,1], index: 7, kind: output, shape index: {}]
  %s8 = sld [smem:[#allocation0]]
  $region38: #{discriminator_forward.1} parent=0
    _
  %s10 = ssub.s32 1, %s8
  %s11 = scalar_select 0, %s10, %s8
  // Predicated region
  $region2: #{discriminator_forward.1} parent=0 // pred_check
    _
  $region3: #{discriminator_forward.1} parent=0 // pred_check_branch
    %13 = sbr.rel (0) target = $region5
  $region4: #{discriminator_forward.1} parent=0 // pred_region
    _
  $region5: #{discriminator_forward.1} parent=0 // pred_fallthru
    _
  // Predicated region
  $region6: #{discriminator_forward.1} parent=0 // pred_check
    _
  $region7: #{discriminator_forward.1} parent=0 // pred_check_branch
    %15 = sbr.rel (0) target = $region9
  $region8: #{discriminator_forward.1} parent=0 // pred_region
    _
  $region9: #{discriminator_forward.1} parent=0 // pred_fallthru
    _
  // Predicated region
  $region10: #{discriminator_forward.1} parent=0 // pred_check
    _
  $region11: #{discriminator_forward.1} parent=0 // pred_check_branch
    %17 = sbr.rel (0) target = $region13
  $region12: #{discriminator_forward.1} parent=0 // pred_region
    _
  $region13: #{discriminator_forward.1} parent=0 // pred_fallthru
    _
  // Predicated region
  $region14: #{discriminator_forward.1} parent=0 // pred_check
    _
  $region15: #{discriminator_forward.1} parent=0 // pred_check_branch
    %19 = sbr.rel (0) target = $region17
  $region16: #{discriminator_forward.1} parent=0 // pred_region
    _
  $region17: #{discriminator_forward.1} parent=0 // pred_fallthru
    _
  // Predicated region
  $region18: #{discriminator_forward.1} parent=0 // pred_check
    _
  $region19: #{discriminator_forward.1} parent=0 // pred_check_branch
    %21 = sbr.rel (0) target = $region21
  $region20: #{discriminator_forward.1} parent=0 // pred_region
    _
  $region21: #{discriminator_forward.1} parent=0 // pred_fallthru
    _
  // Predicated region
  $region22: #{discriminator_forward.1} parent=0 // pred_check
    _
  $region23: #{discriminator_forward.1} parent=0 // pred_check_branch
    %23 = sbr.rel (0) target = $region25
  $region24: #{discriminator_forward.1} parent=0 // pred_region
    _
  $region25: #{discriminator_forward.1} parent=0 // pred_fallthru
    _
  // Predicated region
  $region26: #{discriminator_forward.1} parent=0 // pred_check
    _
  $region27: #{discriminator_forward.1} parent=0 // pred_check_branch
    %25 = sbr.rel (0) target = $region29
  $region28: #{discriminator_forward.1} parent=0 // pred_region
    _
  $region29: #{discriminator_forward.1} parent=0 // pred_fallthru
    _
  %v27 = vld [vmem:[%s6] sm:$0xff]
  %v28 = vld [vmem:[%s6 + $0x8] sm:$0xff]
  %v29 = vld [vmem:[%s6 + $0x10] sm:$0xff]
  %v30 = vld [vmem:[%s6 + $0x18] sm:$0xff]
  %v31 = vld [vmem:[%s0] sm:$0xff]
  %v32 = vld [vmem:[%s0 + $0x8] sm:$0xff]
  %v33 = vld [vmem:[%s0 + $0x10] sm:$0xff]
  %v34 = vld [vmem:[%s0 + $0x18] sm:$0xf]
  %v35 = vld [vmem:[%s1] sm:$0xff]
  %v36 = vld [vmem:[%s1 + $0x8] sm:$0xff]
  %v37 = vld [vmem:[%s1 + $0x10] sm:$0xff]
  %v38 = vld [vmem:[%s1 + $0x18] sm:$0xff]
  %v39 = vld [vmem:[%s1 + $0x20] sm:$0xff]
  %v40 = vld [vmem:[%s1 + $0x28] sm:$0xff]
  %v41 = vld [vmem:[%s1 + $0x30] sm:$0xff]
  %v42 = vld [vmem:[%s1 + $0x38] sm:$0xff]
  %v43 = vld [vmem:[%s1 + $0x40] sm:$0xff]
  %v44 = vld [vmem:[%s1 + $0x48] sm:$0xff]
  %v45 = vld [vmem:[%s1 + $0x50] sm:$0xff]
  %v46 = vld [vmem:[%s1 + $0x58] sm:$0xff]
  %v47 = vld [vmem:[%s1 + $0x60] sm:$0xff]
  %v48 = vld [vmem:[%s1 + $0x68] sm:$0xff]
  %v49 = vld [vmem:[%s1 + $0x70] sm:$0xff]
  %v50 = vld [vmem:[%s1 + $0x78] sm:$0xff]
  %v51 = vld [vmem:[%s1 + $0x80] sm:$0xff]
  %v52 = vld [vmem:[%s1 + $0x88] sm:$0xff]
  %v53 = vld [vmem:[%s1 + $0x90] sm:$0xff]
  %v54 = vld [vmem:[%s1 + $0x98] sm:$0xff]
  %v55 = vld [vmem:[%s1 + $0xa0] sm:$0xff]
  %v56 = vld [vmem:[%s1 + $0xa8] sm:$0xff]
  %v57 = vld [vmem:[%s1 + $0xb0] sm:$0xff]
  %v58 = vld [vmem:[%s1 + $0xb8] sm:$0xff]
  %v59 = vld [vmem:[%s1 + $0xc0] sm:$0xff]
  %v60 = vld [vmem:[%s1 + $0xc8] sm:$0xff]
  %v61 = vld [vmem:[%s1 + $0xd0] sm:$0xff]
  %v62 = vld [vmem:[%s1 + $0xd8] sm:$0xff]
  %v63 = vld [vmem:[%s1 + $0xe0] sm:$0xff]
  %v64 = vld [vmem:[%s1 + $0xe8] sm:$0xff]
  %v65 = vld [vmem:[%s1 + $0xf0] sm:$0xff]
  %v66 = vld [vmem:[%s1 + $0xf8] sm:$0xff]
  %v67 = vld [vmem:[%s1 + $0x100] sm:$0xff]
  %v68 = vld [vmem:[%s1 + $0x108] sm:$0xff]
  %v69 = vld [vmem:[%s1 + $0x110] sm:$0xff]
  %v70 = vld [vmem:[%s1 + $0x118] sm:$0xff]
  %v71 = vld [vmem:[%s1 + $0x120] sm:$0xff]
  %v72 = vld [vmem:[%s1 + $0x128] sm:$0xff]
  %v73 = vld [vmem:[%s1 + $0x130] sm:$0xff]
  %v74 = vld [vmem:[%s1 + $0x138] sm:$0xff]
  %v75 = vld [vmem:[%s1 + $0x140] sm:$0xff]
  %v76 = vld [vmem:[%s1 + $0x148] sm:$0xff]
  %v77 = vld [vmem:[%s1 + $0x150] sm:$0xff]
  %v78 = vld [vmem:[%s1 + $0x158] sm:$0xff]
  %v79 = vld [vmem:[%s1 + $0x160] sm:$0xff]
  %v80 = vld [vmem:[%s1 + $0x168] sm:$0xff]
  %v81 = vld [vmem:[%s1 + $0x170] sm:$0xff]
  %v82 = vld [vmem:[%s1 + $0x178] sm:$0xff]
  %v83 = vld [vmem:[%s1 + $0x180] sm:$0xff]
  %v84 = vld [vmem:[%s1 + $0x188] sm:$0xff]
  %v85 = vld [vmem:[%s1 + $0x190] sm:$0xff]
  %v86 = vld [vmem:[%s1 + $0x198] sm:$0xff]
  %v87 = vld [vmem:[%s1 + $0x1a0] sm:$0xff]
  %v88 = vld [vmem:[%s1 + $0x1a8] sm:$0xff]
  %v89 = vld [vmem:[%s1 + $0x1b0] sm:$0xff]
  %v90 = vld [vmem:[%s1 + $0x1b8] sm:$0xff]
  %v91 = vld [vmem:[%s1 + $0x1c0] sm:$0xff]
  %v92 = vld [vmem:[%s1 + $0x1c8] sm:$0xff]
  %v93 = vld [vmem:[%s1 + $0x1d0] sm:$0xff]
  %v94 = vld [vmem:[%s1 + $0x1d8] sm:$0xff]
  %v95 = vld [vmem:[%s1 + $0x1e0] sm:$0xff]
  %v96 = vld [vmem:[%s1 + $0x1e8] sm:$0xff]
  %v97 = vld [vmem:[%s1 + $0x1f0] sm:$0xff]
  %v98 = vld [vmem:[%s1 + $0x1f8] sm:$0xff]
  %v99 = vld [vmem:[%s1 + $0x200] sm:$0xff]
  %v100 = vld [vmem:[%s1 + $0x208] sm:$0xff]
  %v101 = vld [vmem:[%s1 + $0x210] sm:$0xff]
  %v102 = vld [vmem:[%s1 + $0x218] sm:$0xff]
  %v103 = vld [vmem:[%s1 + $0x220] sm:$0xff]
  %v104 = vld [vmem:[%s1 + $0x228] sm:$0xff]
  %v105 = vld [vmem:[%s1 + $0x230] sm:$0xff]
  %v106 = vld [vmem:[%s1 + $0x238] sm:$0xff]
  %v107 = vld [vmem:[%s1 + $0x240] sm:$0xff]
  %v108 = vld [vmem:[%s1 + $0x248] sm:$0xff]
  %v109 = vld [vmem:[%s1 + $0x250] sm:$0xff]
  %v110 = vld [vmem:[%s1 + $0x258] sm:$0xff]
  %v111 = vld [vmem:[%s1 + $0x260] sm:$0xff]
  %v112 = vld [vmem:[%s1 + $0x268] sm:$0xff]
  %v113 = vld [vmem:[%s1 + $0x270] sm:$0xff]
  %v114 = vld [vmem:[%s1 + $0x278] sm:$0xff]
  %v115 = vld [vmem:[%s1 + $0x280] sm:$0xff]
  %v116 = vld [vmem:[%s1 + $0x288] sm:$0xff]
  %v117 = vld [vmem:[%s1 + $0x290] sm:$0xff]
  %v118 = vld [vmem:[%s1 + $0x298] sm:$0xff]
  %v119 = vld [vmem:[%s1 + $0x2a0] sm:$0xff]
  %v120 = vld [vmem:[%s1 + $0x2a8] sm:$0xff]
  %v121 = vld [vmem:[%s1 + $0x2b0] sm:$0xff]
  %v122 = vld [vmem:[%s1 + $0x2b8] sm:$0xff]
  %v123 = vld [vmem:[%s1 + $0x2c0] sm:$0xff]
  %v124 = vld [vmem:[%s1 + $0x2c8] sm:$0xff]
  %v125 = vld [vmem:[%s1 + $0x2d0] sm:$0xff]
  %v126 = vld [vmem:[%s1 + $0x2d8] sm:$0xff]
  %v127 = vld [vmem:[%s1 + $0x2e0] sm:$0xff]
  %v128 = vld [vmem:[%s1 + $0x2e8] sm:$0xff]
  %v129 = vld [vmem:[%s1 + $0x2f0] sm:$0xff]
  %v130 = vld [vmem:[%s1 + $0x2f8] sm:$0xff]
  %v131 = vld [vmem:[%s1 + $0x300] sm:$0xff]
  %v132 = vld [vmem:[%s1 + $0x308] sm:$0xff]
  %v133 = vld [vmem:[%s1 + $0x310] sm:$0xff]
  %v134 = vld [vmem:[%s1 + $0x318] sm:$0xff]
  %v135 = vld [vmem:[%s1 + $0x320] sm:$0xff]
  %v136 = vld [vmem:[%s1 + $0x328] sm:$0xff]
  %v137 = vld [vmem:[%s1 + $0x330] sm:$0xff]
  %v138 = vld [vmem:[%s1 + $0x338] sm:$0xff]
  %v139 = vld [vmem:[%s1 + $0x340] sm:$0xff]
  %v140 = vld [vmem:[%s1 + $0x348] sm:$0xff]
  %v141 = vld [vmem:[%s1 + $0x350] sm:$0xff]
  %v142 = vld [vmem:[%s1 + $0x358] sm:$0xff]
  %v143 = vld [vmem:[%s1 + $0x360] sm:$0xff]
  %v144 = vld [vmem:[%s1 + $0x368] sm:$0xff]
  %v145 = vld [vmem:[%s1 + $0x370] sm:$0xff]
  %v146 = vld [vmem:[%s1 + $0x378] sm:$0xff]
  %v147 = vld [vmem:[%s1 + $0x380] sm:$0xff]
  %v148 = vld [vmem:[%s1 + $0x388] sm:$0xff]
  %v149 = vld [vmem:[%s1 + $0x390] sm:$0xff]
  %v150 = vld [vmem:[%s1 + $0x398] sm:$0xff]
  %v151 = vld [vmem:[%s1 + $0x3a0] sm:$0xff]
  %v152 = vld [vmem:[%s1 + $0x3a8] sm:$0xff]
  %v153 = vld [vmem:[%s1 + $0x3b0] sm:$0xff]
  %v154 = vld [vmem:[%s1 + $0x3b8] sm:$0xff]
  %v155 = vld [vmem:[%s1 + $0x3c0] sm:$0xff]
  %v156 = vld [vmem:[%s1 + $0x3c8] sm:$0xff]
  %v157 = vld [vmem:[%s1 + $0x3d0] sm:$0xff]
  %v158 = vld [vmem:[%s1 + $0x3d8] sm:$0xff]
  %v159 = vld [vmem:[%s1 + $0x3e0] sm:$0xff]
  %v160 = vld [vmem:[%s1 + $0x3e8] sm:$0xff]
  %v161 = vld [vmem:[%s1 + $0x3f0] sm:$0xff]
  %v162 = vld [vmem:[%s1 + $0x3f8] sm:$0xff]
  %v163 = vld [vmem:[%s1 + $0x400] sm:$0xff]
  %v164 = vld [vmem:[%s1 + $0x408] sm:$0xff]
  %v165 = vld [vmem:[%s1 + $0x410] sm:$0xff]
  %v166 = vld [vmem:[%s1 + $0x418] sm:$0xff]
  %v167 = vld [vmem:[%s1 + $0x420] sm:$0xff]
  %v168 = vld [vmem:[%s1 + $0x428] sm:$0xff]
  %v169 = vld [vmem:[%s1 + $0x430] sm:$0xff]
  %v170 = vld [vmem:[%s1 + $0x438] sm:$0xff]
  %v171 = vld [vmem:[%s1 + $0x440] sm:$0xff]
  %v172 = vld [vmem:[%s1 + $0x448] sm:$0xff]
  %v173 = vld [vmem:[%s1 + $0x450] sm:$0xff]
  %v174 = vld [vmem:[%s1 + $0x458] sm:$0xff]
  %v175 = vld [vmem:[%s1 + $0x460] sm:$0xff]
  %v176 = vld [vmem:[%s1 + $0x468] sm:$0xff]
  %v177 = vld [vmem:[%s1 + $0x470] sm:$0xff]
  %v178 = vld [vmem:[%s1 + $0x478] sm:$0xff]
  %v179 = vld [vmem:[%s1 + $0x480] sm:$0xff]
  %v180 = vld [vmem:[%s1 + $0x488] sm:$0xff]
  %v181 = vld [vmem:[%s1 + $0x490] sm:$0xff]
  %v182 = vld [vmem:[%s1 + $0x498] sm:$0xff]
  %v183 = vld [vmem:[%s1 + $0x4a0] sm:$0xff]
  %v184 = vld [vmem:[%s1 + $0x4a8] sm:$0xff]
  %v185 = vld [vmem:[%s1 + $0x4b0] sm:$0xff]
  %v186 = vld [vmem:[%s1 + $0x4b8] sm:$0xff]
  %v187 = vld [vmem:[%s1 + $0x4c0] sm:$0xff]
  %v188 = vld [vmem:[%s1 + $0x4c8] sm:$0xff]
  %v189 = vld [vmem:[%s1 + $0x4d0] sm:$0xff]
  %v190 = vld [vmem:[%s1 + $0x4d8] sm:$0xff]
  %v191 = vld [vmem:[%s1 + $0x4e0] sm:$0xff]
  %v192 = vld [vmem:[%s1 + $0x4e8] sm:$0xff]
  %v193 = vld [vmem:[%s1 + $0x4f0] sm:$0xff]
  %v194 = vld [vmem:[%s1 + $0x4f8] sm:$0xff]
  %v195 = vld [vmem:[%s1 + $0x500] sm:$0xff]
  %v196 = vld [vmem:[%s1 + $0x508] sm:$0xff]
  %v197 = vld [vmem:[%s1 + $0x510] sm:$0xff]
  %v198 = vld [vmem:[%s1 + $0x518] sm:$0xff]
  %v199 = vld [vmem:[%s1 + $0x520] sm:$0xff]
  %v200 = vld [vmem:[%s1 + $0x528] sm:$0xff]
  %v201 = vld [vmem:[%s1 + $0x530] sm:$0xff]
  %v202 = vld [vmem:[%s1 + $0x538] sm:$0xff]
  %v203 = vld [vmem:[%s1 + $0x540] sm:$0xff]
  %v204 = vld [vmem:[%s1 + $0x548] sm:$0xff]
  %v205 = vld [vmem:[%s1 + $0x550] sm:$0xff]
  %v206 = vld [vmem:[%s1 + $0x558] sm:$0xff]
  %v207 = vld [vmem:[%s1 + $0x560] sm:$0xff]
  %v208 = vld [vmem:[%s1 + $0x568] sm:$0xff]
  %v209 = vld [vmem:[%s1 + $0x570] sm:$0xff]
  %v210 = vld [vmem:[%s1 + $0x578] sm:$0xff]
  %v211 = vld [vmem:[%s1 + $0x580] sm:$0xff]
  %v212 = vld [vmem:[%s1 + $0x588] sm:$0xff]
  %v213 = vld [vmem:[%s1 + $0x590] sm:$0xff]
  %v214 = vld [vmem:[%s1 + $0x598] sm:$0xff]
  %v215 = vld [vmem:[%s1 + $0x5a0] sm:$0xff]
  %v216 = vld [vmem:[%s1 + $0x5a8] sm:$0xff]
  %v217 = vld [vmem:[%s1 + $0x5b0] sm:$0xff]
  %v218 = vld [vmem:[%s1 + $0x5b8] sm:$0xff]
  %v219 = vld [vmem:[%s1 + $0x5c0] sm:$0xff]
  %v220 = vld [vmem:[%s1 + $0x5c8] sm:$0xff]
  %v221 = vld [vmem:[%s1 + $0x5d0] sm:$0xff]
  %v222 = vld [vmem:[%s1 + $0x5d8] sm:$0xff]
  %v223 = vld [vmem:[%s1 + $0x5e0] sm:$0xff]
  %v224 = vld [vmem:[%s1 + $0x5e8] sm:$0xff]
  %v225 = vld [vmem:[%s1 + $0x5f0] sm:$0xff]
  %v226 = vld [vmem:[%s1 + $0x5f8] sm:$0xff]
  %v227 = vld [vmem:[%s1 + $0x600] sm:$0xff]
  %v228 = vld [vmem:[%s1 + $0x608] sm:$0xff]
  %v229 = vld [vmem:[%s1 + $0x610] sm:$0xff]
  %v230 = vld [vmem:[%s1 + $0x618] sm:$0xff]
  %v231 = vld [vmem:[%s1 + $0x620] sm:$0xff]
  %v232 = vld [vmem:[%s1 + $0x628] sm:$0xff]
  %v233 = vld [vmem:[%s1 + $0x630] sm:$0xff]
  %v234 = vld [vmem:[%s1 + $0x638] sm:$0xff]
  %v235 = vld [vmem:[%s1 + $0x640] sm:$0xff]
  %v236 = vld [vmem:[%s1 + $0x648] sm:$0xff]
  %v237 = vld [vmem:[%s1 + $0x650] sm:$0xff]
  %v238 = vld [vmem:[%s1 + $0x658] sm:$0xff]
  %v239 = vld [vmem:[%s1 + $0x660] sm:$0xff]
  %v240 = vld [vmem:[%s1 + $0x668] sm:$0xff]
  %v241 = vld [vmem:[%s1 + $0x670] sm:$0xff]
  %v242 = vld [vmem:[%s1 + $0x678] sm:$0xff]
  %v243 = vld [vmem:[%s1 + $0x680] sm:$0xff]
  %v244 = vld [vmem:[%s1 + $0x688] sm:$0xff]
  %v245 = vld [vmem:[%s1 + $0x690] sm:$0xff]
  %v246 = vld [vmem:[%s1 + $0x698] sm:$0xff]
  %v247 = vld [vmem:[%s1 + $0x6a0] sm:$0xff]
  %v248 = vld [vmem:[%s1 + $0x6a8] sm:$0xff]
  %v249 = vld [vmem:[%s1 + $0x6b0] sm:$0xff]
  %v250 = vld [vmem:[%s1 + $0x6b8] sm:$0xff]
  %v251 = vld [vmem:[%s1 + $0x6c0] sm:$0xff]
  %v252 = vld [vmem:[%s1 + $0x6c8] sm:$0xff]
  %v253 = vld [vmem:[%s1 + $0x6d0] sm:$0xff]
  %v254 = vld [vmem:[%s1 + $0x6d8] sm:$0xff]
  %v255 = vld [vmem:[%s1 + $0x6e0] sm:$0xff]
  %v256 = vld [vmem:[%s1 + $0x6e8] sm:$0xff]
  %v257 = vld [vmem:[%s1 + $0x6f0] sm:$0xff]
  %v258 = vld [vmem:[%s1 + $0x6f8] sm:$0xff]
  %v259 = vlaneseq
  %v260 = vshrl.u32 %v259, 7
  %v261 = vsub.s32 0, %v260
  %v262 = vrot.slane %v27, %v261
  %v263 = vlaneseq
  %v264 = vshrl.u32 %v263, 7
  %v265 = vsub.s32 0, %v264
  %v266 = vrot.slane %v28, %v265
  %v267 = vlaneseq
  %v268 = vshrl.u32 %v267, 7
  %v269 = vsub.s32 0, %v268
  %v270 = vrot.slane %v29, %v269
  %v271 = vlaneseq
  %v272 = vshrl.u32 %v271, 7
  %v273 = vsub.s32 0, %v272
  %v274 = vrot.slane %v30, %v273
  %v279 = vunpack.c.l.b16 %v31
  %v280 = vunpack.c.h.b16 %v31
  %v281 = vunpack.c.l.b16 %v32
  %v282 = vunpack.c.h.b16 %v32
  %v283 = vunpack.c.l.b16 %v33
  %v284 = vunpack.c.h.b16 %v33
  %v285 = vunpack.c.l.b16 %v34
  %v286 = vpack.c.b16 %v279, %v279
  %v287 = vpack.c.b16 %v280, %v280
  %v288 = vpack.c.b16 %v281, %v281
  %v289 = vpack.c.b16 %v282, %v282
  %v290 = vpack.c.b16 %v283, %v283
  %v291 = vpack.c.b16 %v284, %v284
  %v292 = vpack.c.b16 %v285, %v285
  %v524 = vunpack.c.l.b16 %v35
  %v525 = vunpack.c.h.b16 %v35
  %v526 = vunpack.c.l.b16 %v36
  %v527 = vunpack.c.h.b16 %v36
  %v528 = vunpack.c.l.b16 %v37
  %v529 = vunpack.c.h.b16 %v37
  %v530 = vunpack.c.l.b16 %v38
  %v531 = vunpack.c.h.b16 %v38
  %v532 = vunpack.c.l.b16 %v39
  %v533 = vunpack.c.h.b16 %v39
  %v534 = vunpack.c.l.b16 %v40
  %v535 = vunpack.c.h.b16 %v40
  %v536 = vunpack.c.l.b16 %v41
  %v537 = vunpack.c.h.b16 %v41
  %v538 = vunpack.c.l.b16 %v42
  %v539 = vunpack.c.h.b16 %v42
  %v540 = vunpack.c.l.b16 %v43
  %v541 = vunpack.c.h.b16 %v43
  %v542 = vunpack.c.l.b16 %v44
  %v543 = vunpack.c.h.b16 %v44
  %v544 = vunpack.c.l.b16 %v45
  %v545 = vunpack.c.h.b16 %v45
  %v546 = vunpack.c.l.b16 %v46
  %v547 = vunpack.c.h.b16 %v46
  %v548 = vunpack.c.l.b16 %v47
  %v549 = vunpack.c.h.b16 %v47
  %v550 = vunpack.c.l.b16 %v48
  %v551 = vunpack.c.h.b16 %v48
  %v552 = vunpack.c.l.b16 %v49
  %v553 = vunpack.c.h.b16 %v49
  %v554 = vunpack.c.l.b16 %v50
  %v555 = vunpack.c.h.b16 %v50
  %v556 = vunpack.c.l.b16 %v51
  %v557 = vunpack.c.h.b16 %v51
  %v558 = vunpack.c.l.b16 %v52
  %v559 = vunpack.c.h.b16 %v52
  %v560 = vunpack.c.l.b16 %v53
  %v561 = vunpack.c.h.b16 %v53
  %v562 = vunpack.c.l.b16 %v54
  %v563 = vunpack.c.h.b16 %v54
  %v564 = vunpack.c.l.b16 %v55
  %v565 = vunpack.c.h.b16 %v55
  %v566 = vunpack.c.l.b16 %v56
  %v567 = vunpack.c.h.b16 %v56
  %v568 = vunpack.c.l.b16 %v57
  %v569 = vunpack.c.h.b16 %v57
  %v570 = vunpack.c.l.b16 %v58
  %v571 = vunpack.c.h.b16 %v58
  %v572 = vunpack.c.l.b16 %v59
  %v573 = vunpack.c.h.b16 %v59
  %v574 = vunpack.c.l.b16 %v60
  %v575 = vunpack.c.h.b16 %v60
  %v576 = vunpack.c.l.b16 %v61
  %v577 = vunpack.c.h.b16 %v61
  %v578 = vunpack.c.l.b16 %v62
  %v579 = vunpack.c.h.b16 %v62
  %v580 = vunpack.c.l.b16 %v63
  %v581 = vunpack.c.h.b16 %v63
  %v582 = vunpack.c.l.b16 %v64
  %v583 = vunpack.c.h.b16 %v64
  %v584 = vunpack.c.l.b16 %v65
  %v585 = vunpack.c.h.b16 %v65
  %v586 = vunpack.c.l.b16 %v66
  %v587 = vunpack.c.h.b16 %v66
  %v588 = vunpack.c.l.b16 %v67
  %v589 = vunpack.c.h.b16 %v67
  %v590 = vunpack.c.l.b16 %v68
  %v591 = vunpack.c.h.b16 %v68
  %v592 = vunpack.c.l.b16 %v69
  %v593 = vunpack.c.h.b16 %v69
  %v594 = vunpack.c.l.b16 %v70
  %v595 = vunpack.c.h.b16 %v70
  %v596 = vunpack.c.l.b16 %v71
  %v597 = vunpack.c.h.b16 %v71
  %v598 = vunpack.c.l.b16 %v72
  %v599 = vunpack.c.h.b16 %v72
  %v600 = vunpack.c.l.b16 %v73
  %v601 = vunpack.c.h.b16 %v73
  %v602 = vunpack.c.l.b16 %v74
  %v603 = vunpack.c.h.b16 %v74
  %v604 = vunpack.c.l.b16 %v75
  %v605 = vunpack.c.h.b16 %v75
  %v606 = vunpack.c.l.b16 %v76
  %v607 = vunpack.c.h.b16 %v76
  %v608 = vunpack.c.l.b16 %v77
  %v609 = vunpack.c.h.b16 %v77
  %v610 = vunpack.c.l.b16 %v78
  %v611 = vunpack.c.h.b16 %v78
  %v612 = vunpack.c.l.b16 %v79
  %v613 = vunpack.c.h.b16 %v79
  %v614 = vunpack.c.l.b16 %v80
  %v615 = vunpack.c.h.b16 %v80
  %v616 = vunpack.c.l.b16 %v81
  %v617 = vunpack.c.h.b16 %v81
  %v618 = vunpack.c.l.b16 %v82
  %v619 = vunpack.c.h.b16 %v82
  %v620 = vunpack.c.l.b16 %v83
  %v621 = vunpack.c.h.b16 %v83
  %v622 = vunpack.c.l.b16 %v84
  %v623 = vunpack.c.h.b16 %v84
  %v624 = vunpack.c.l.b16 %v85
  %v625 = vunpack.c.h.b16 %v85
  %v626 = vunpack.c.l.b16 %v86
  %v627 = vunpack.c.h.b16 %v86
  %v628 = vunpack.c.l.b16 %v87
  %v629 = vunpack.c.h.b16 %v87
  %v630 = vunpack.c.l.b16 %v88
  %v631 = vunpack.c.h.b16 %v88
  %v632 = vunpack.c.l.b16 %v89
  %v633 = vunpack.c.h.b16 %v89
  %v634 = vunpack.c.l.b16 %v90
  %v635 = vunpack.c.h.b16 %v90
  %v636 = vunpack.c.l.b16 %v91
  %v637 = vunpack.c.h.b16 %v91
  %v638 = vunpack.c.l.b16 %v92
  %v639 = vunpack.c.h.b16 %v92
  %v640 = vunpack.c.l.b16 %v93
  %v641 = vunpack.c.h.b16 %v93
  %v642 = vunpack.c.l.b16 %v94
  %v643 = vunpack.c.h.b16 %v94
  %v644 = vunpack.c.l.b16 %v95
  %v645 = vunpack.c.h.b16 %v95
  %v646 = vunpack.c.l.b16 %v96
  %v647 = vunpack.c.h.b16 %v96
  %v648 = vunpack.c.l.b16 %v97
  %v649 = vunpack.c.h.b16 %v97
  %v650 = vunpack.c.l.b16 %v98
  %v651 = vunpack.c.h.b16 %v98
  %v652 = vunpack.c.l.b16 %v99
  %v653 = vunpack.c.h.b16 %v99
  %v654 = vunpack.c.l.b16 %v100
  %v655 = vunpack.c.h.b16 %v100
  %v656 = vunpack.c.l.b16 %v101
  %v657 = vunpack.c.h.b16 %v101
  %v658 = vunpack.c.l.b16 %v102
  %v659 = vunpack.c.h.b16 %v102
  %v660 = vunpack.c.l.b16 %v103
  %v661 = vunpack.c.h.b16 %v103
  %v662 = vunpack.c.l.b16 %v104
  %v663 = vunpack.c.h.b16 %v104
  %v664 = vunpack.c.l.b16 %v105
  %v665 = vunpack.c.h.b16 %v105
  %v666 = vunpack.c.l.b16 %v106
  %v667 = vunpack.c.h.b16 %v106
  %v668 = vunpack.c.l.b16 %v107
  %v669 = vunpack.c.h.b16 %v107
  %v670 = vunpack.c.l.b16 %v108
  %v671 = vunpack.c.h.b16 %v108
  %v672 = vunpack.c.l.b16 %v109
  %v673 = vunpack.c.h.b16 %v109
  %v674 = vunpack.c.l.b16 %v110
  %v675 = vunpack.c.h.b16 %v110
  %v676 = vunpack.c.l.b16 %v111
  %v677 = vunpack.c.h.b16 %v111
  %v678 = vunpack.c.l.b16 %v112
  %v679 = vunpack.c.h.b16 %v112
  %v680 = vunpack.c.l.b16 %v113
  %v681 = vunpack.c.h.b16 %v113
  %v682 = vunpack.c.l.b16 %v114
  %v683 = vunpack.c.h.b16 %v114
  %v684 = vunpack.c.l.b16 %v115
  %v685 = vunpack.c.h.b16 %v115
  %v686 = vunpack.c.l.b16 %v116
  %v687 = vunpack.c.h.b16 %v116
  %v688 = vunpack.c.l.b16 %v117
  %v689 = vunpack.c.h.b16 %v117
  %v690 = vunpack.c.l.b16 %v118
  %v691 = vunpack.c.h.b16 %v118
  %v692 = vunpack.c.l.b16 %v119
  %v693 = vunpack.c.h.b16 %v119
  %v694 = vunpack.c.l.b16 %v120
  %v695 = vunpack.c.h.b16 %v120
  %v696 = vunpack.c.l.b16 %v121
  %v697 = vunpack.c.h.b16 %v121
  %v698 = vunpack.c.l.b16 %v122
  %v699 = vunpack.c.h.b16 %v122
  %v700 = vunpack.c.l.b16 %v123
  %v701 = vunpack.c.h.b16 %v123
  %v702 = vunpack.c.l.b16 %v124
  %v703 = vunpack.c.h.b16 %v124
  %v704 = vunpack.c.l.b16 %v125
  %v705 = vunpack.c.h.b16 %v125
  %v706 = vunpack.c.l.b16 %v126
  %v707 = vunpack.c.h.b16 %v126
  %v708 = vunpack.c.l.b16 %v127
  %v709 = vunpack.c.h.b16 %v127
  %v710 = vunpack.c.l.b16 %v128
  %v711 = vunpack.c.h.b16 %v128
  %v712 = vunpack.c.l.b16 %v129
  %v713 = vunpack.c.h.b16 %v129
  %v714 = vunpack.c.l.b16 %v130
  %v715 = vunpack.c.h.b16 %v130
  %v716 = vunpack.c.l.b16 %v131
  %v717 = vunpack.c.h.b16 %v131
  %v718 = vunpack.c.l.b16 %v132
  %v719 = vunpack.c.h.b16 %v132
  %v720 = vunpack.c.l.b16 %v133
  %v721 = vunpack.c.h.b16 %v133
  %v722 = vunpack.c.l.b16 %v134
  %v723 = vunpack.c.h.b16 %v134
  %v724 = vunpack.c.l.b16 %v135
  %v725 = vunpack.c.h.b16 %v135
  %v726 = vunpack.c.l.b16 %v136
  %v727 = vunpack.c.h.b16 %v136
  %v728 = vunpack.c.l.b16 %v137
  %v729 = vunpack.c.h.b16 %v137
  %v730 = vunpack.c.l.b16 %v138
  %v731 = vunpack.c.h.b16 %v138
  %v732 = vunpack.c.l.b16 %v139
  %v733 = vunpack.c.h.b16 %v139
  %v734 = vunpack.c.l.b16 %v140
  %v735 = vunpack.c.h.b16 %v140
  %v736 = vunpack.c.l.b16 %v141
  %v737 = vunpack.c.h.b16 %v141
  %v738 = vunpack.c.l.b16 %v142
  %v739 = vunpack.c.h.b16 %v142
  %v740 = vunpack.c.l.b16 %v143
  %v741 = vunpack.c.h.b16 %v143
  %v742 = vunpack.c.l.b16 %v144
  %v743 = vunpack.c.h.b16 %v144
  %v744 = vunpack.c.l.b16 %v145
  %v745 = vunpack.c.h.b16 %v145
  %v746 = vunpack.c.l.b16 %v146
  %v747 = vunpack.c.h.b16 %v146
  %v748 = vunpack.c.l.b16 %v147
  %v749 = vunpack.c.h.b16 %v147
  %v750 = vunpack.c.l.b16 %v148
  %v751 = vunpack.c.h.b16 %v148
  %v752 = vunpack.c.l.b16 %v149
  %v753 = vunpack.c.h.b16 %v149
  %v754 = vunpack.c.l.b16 %v150
  %v755 = vunpack.c.h.b16 %v150
  %v756 = vunpack.c.l.b16 %v151
  %v757 = vunpack.c.h.b16 %v151
  %v758 = vunpack.c.l.b16 %v152
  %v759 = vunpack.c.h.b16 %v152
  %v760 = vunpack.c.l.b16 %v153
  %v761 = vunpack.c.h.b16 %v153
  %v762 = vunpack.c.l.b16 %v154
  %v763 = vunpack.c.h.b16 %v154
  %v764 = vunpack.c.l.b16 %v155
  %v765 = vunpack.c.h.b16 %v155
  %v766 = vunpack.c.l.b16 %v156
  %v767 = vunpack.c.h.b16 %v156
  %v768 = vunpack.c.l.b16 %v157
  %v769 = vunpack.c.h.b16 %v157
  %v770 = vunpack.c.l.b16 %v158
  %v771 = vunpack.c.h.b16 %v158
  %v772 = vunpack.c.l.b16 %v159
  %v773 = vunpack.c.h.b16 %v159
  %v774 = vunpack.c.l.b16 %v160
  %v775 = vunpack.c.h.b16 %v160
  %v776 = vunpack.c.l.b16 %v161
  %v777 = vunpack.c.h.b16 %v161
  %v778 = vunpack.c.l.b16 %v162
  %v779 = vunpack.c.h.b16 %v162
  %v780 = vunpack.c.l.b16 %v163
  %v781 = vunpack.c.h.b16 %v163
  %v782 = vunpack.c.l.b16 %v164
  %v783 = vunpack.c.h.b16 %v164
  %v784 = vunpack.c.l.b16 %v165
  %v785 = vunpack.c.h.b16 %v165
  %v786 = vunpack.c.l.b16 %v166
  %v787 = vunpack.c.h.b16 %v166
  %v788 = vunpack.c.l.b16 %v167
  %v789 = vunpack.c.h.b16 %v167
  %v790 = vunpack.c.l.b16 %v168
  %v791 = vunpack.c.h.b16 %v168
  %v792 = vunpack.c.l.b16 %v169
  %v793 = vunpack.c.h.b16 %v169
  %v794 = vunpack.c.l.b16 %v170
  %v795 = vunpack.c.h.b16 %v170
  %v796 = vunpack.c.l.b16 %v171
  %v797 = vunpack.c.h.b16 %v171
  %v798 = vunpack.c.l.b16 %v172
  %v799 = vunpack.c.h.b16 %v172
  %v800 = vunpack.c.l.b16 %v173
  %v801 = vunpack.c.h.b16 %v173
  %v802 = vunpack.c.l.b16 %v174
  %v803 = vunpack.c.h.b16 %v174
  %v804 = vunpack.c.l.b16 %v175
  %v805 = vunpack.c.h.b16 %v175
  %v806 = vunpack.c.l.b16 %v176
  %v807 = vunpack.c.h.b16 %v176
  %v808 = vunpack.c.l.b16 %v177
  %v809 = vunpack.c.h.b16 %v177
  %v810 = vunpack.c.l.b16 %v178
  %v811 = vunpack.c.h.b16 %v178
  %v812 = vunpack.c.l.b16 %v179
  %v813 = vunpack.c.h.b16 %v179
  %v814 = vunpack.c.l.b16 %v180
  %v815 = vunpack.c.h.b16 %v180
  %v816 = vunpack.c.l.b16 %v181
  %v817 = vunpack.c.h.b16 %v181
  %v818 = vunpack.c.l.b16 %v182
  %v819 = vunpack.c.h.b16 %v182
  %v820 = vunpack.c.l.b16 %v183
  %v821 = vunpack.c.h.b16 %v183
  %v822 = vunpack.c.l.b16 %v184
  %v823 = vunpack.c.h.b16 %v184
  %v824 = vunpack.c.l.b16 %v185
  %v825 = vunpack.c.h.b16 %v185
  %v826 = vunpack.c.l.b16 %v186
  %v827 = vunpack.c.h.b16 %v186
  %v828 = vunpack.c.l.b16 %v187
  %v829 = vunpack.c.h.b16 %v187
  %v830 = vunpack.c.l.b16 %v188
  %v831 = vunpack.c.h.b16 %v188
  %v832 = vunpack.c.l.b16 %v189
  %v833 = vunpack.c.h.b16 %v189
  %v834 = vunpack.c.l.b16 %v190
  %v835 = vunpack.c.h.b16 %v190
  %v836 = vunpack.c.l.b16 %v191
  %v837 = vunpack.c.h.b16 %v191
  %v838 = vunpack.c.l.b16 %v192
  %v839 = vunpack.c.h.b16 %v192
  %v840 = vunpack.c.l.b16 %v193
  %v841 = vunpack.c.h.b16 %v193
  %v842 = vunpack.c.l.b16 %v194
  %v843 = vunpack.c.h.b16 %v194
  %v844 = vunpack.c.l.b16 %v195
  %v845 = vunpack.c.h.b16 %v195
  %v846 = vunpack.c.l.b16 %v196
  %v847 = vunpack.c.h.b16 %v196
  %v848 = vunpack.c.l.b16 %v197
  %v849 = vunpack.c.h.b16 %v197
  %v850 = vunpack.c.l.b16 %v198
  %v851 = vunpack.c.h.b16 %v198
  %v852 = vunpack.c.l.b16 %v199
  %v853 = vunpack.c.h.b16 %v199
  %v854 = vunpack.c.l.b16 %v200
  %v855 = vunpack.c.h.b16 %v200
  %v856 = vunpack.c.l.b16 %v201
  %v857 = vunpack.c.h.b16 %v201
  %v858 = vunpack.c.l.b16 %v202
  %v859 = vunpack.c.h.b16 %v202
  %v860 = vunpack.c.l.b16 %v203
  %v861 = vunpack.c.h.b16 %v203
  %v862 = vunpack.c.l.b16 %v204
  %v863 = vunpack.c.h.b16 %v204
  %v864 = vunpack.c.l.b16 %v205
  %v865 = vunpack.c.h.b16 %v205
  %v866 = vunpack.c.l.b16 %v206
  %v867 = vunpack.c.h.b16 %v206
  %v868 = vunpack.c.l.b16 %v207
  %v869 = vunpack.c.h.b16 %v207
  %v870 = vunpack.c.l.b16 %v208
  %v871 = vunpack.c.h.b16 %v208
  %v872 = vunpack.c.l.b16 %v209
  %v873 = vunpack.c.h.b16 %v209
  %v874 = vunpack.c.l.b16 %v210
  %v875 = vunpack.c.h.b16 %v210
  %v876 = vunpack.c.l.b16 %v211
  %v877 = vunpack.c.h.b16 %v211
  %v878 = vunpack.c.l.b16 %v212
  %v879 = vunpack.c.h.b16 %v212
  %v880 = vunpack.c.l.b16 %v213
  %v881 = vunpack.c.h.b16 %v213
  %v882 = vunpack.c.l.b16 %v214
  %v883 = vunpack.c.h.b16 %v214
  %v884 = vunpack.c.l.b16 %v215
  %v885 = vunpack.c.h.b16 %v215
  %v886 = vunpack.c.l.b16 %v216
  %v887 = vunpack.c.h.b16 %v216
  %v888 = vunpack.c.l.b16 %v217
  %v889 = vunpack.c.h.b16 %v217
  %v890 = vunpack.c.l.b16 %v218
  %v891 = vunpack.c.h.b16 %v218
  %v892 = vunpack.c.l.b16 %v219
  %v893 = vunpack.c.h.b16 %v219
  %v894 = vunpack.c.l.b16 %v220
  %v895 = vunpack.c.h.b16 %v220
  %v896 = vunpack.c.l.b16 %v221
  %v897 = vunpack.c.h.b16 %v221
  %v898 = vunpack.c.l.b16 %v222
  %v899 = vunpack.c.h.b16 %v222
  %v900 = vunpack.c.l.b16 %v223
  %v901 = vunpack.c.h.b16 %v223
  %v902 = vunpack.c.l.b16 %v224
  %v903 = vunpack.c.h.b16 %v224
  %v904 = vunpack.c.l.b16 %v225
  %v905 = vunpack.c.h.b16 %v225
  %v906 = vunpack.c.l.b16 %v226
  %v907 = vunpack.c.h.b16 %v226
  %v908 = vunpack.c.l.b16 %v227
  %v909 = vunpack.c.h.b16 %v227
  %v910 = vunpack.c.l.b16 %v228
  %v911 = vunpack.c.h.b16 %v228
  %v912 = vunpack.c.l.b16 %v229
  %v913 = vunpack.c.h.b16 %v229
  %v914 = vunpack.c.l.b16 %v230
  %v915 = vunpack.c.h.b16 %v230
  %v916 = vunpack.c.l.b16 %v231
  %v917 = vunpack.c.h.b16 %v231
  %v918 = vunpack.c.l.b16 %v232
  %v919 = vunpack.c.h.b16 %v232
  %v920 = vunpack.c.l.b16 %v233
  %v921 = vunpack.c.h.b16 %v233
  %v922 = vunpack.c.l.b16 %v234
  %v923 = vunpack.c.h.b16 %v234
  %v924 = vunpack.c.l.b16 %v235
  %v925 = vunpack.c.h.b16 %v235
  %v926 = vunpack.c.l.b16 %v236
  %v927 = vunpack.c.h.b16 %v236
  %v928 = vunpack.c.l.b16 %v237
  %v929 = vunpack.c.h.b16 %v237
  %v930 = vunpack.c.l.b16 %v238
  %v931 = vunpack.c.h.b16 %v238
  %v932 = vunpack.c.l.b16 %v239
  %v933 = vunpack.c.h.b16 %v239
  %v934 = vunpack.c.l.b16 %v240
  %v935 = vunpack.c.h.b16 %v240
  %v936 = vunpack.c.l.b16 %v241
  %v937 = vunpack.c.h.b16 %v241
  %v938 = vunpack.c.l.b16 %v242
  %v939 = vunpack.c.h.b16 %v242
  %v940 = vunpack.c.l.b16 %v243
  %v941 = vunpack.c.h.b16 %v243
  %v942 = vunpack.c.l.b16 %v244
  %v943 = vunpack.c.h.b16 %v244
  %v944 = vunpack.c.l.b16 %v245
  %v945 = vunpack.c.h.b16 %v245
  %v946 = vunpack.c.l.b16 %v246
  %v947 = vunpack.c.h.b16 %v246
  %v948 = vunpack.c.l.b16 %v247
  %v949 = vunpack.c.h.b16 %v247
  %v950 = vunpack.c.l.b16 %v248
  %v951 = vunpack.c.h.b16 %v248
  %v952 = vunpack.c.l.b16 %v249
  %v953 = vunpack.c.h.b16 %v249
  %v954 = vunpack.c.l.b16 %v250
  %v955 = vunpack.c.h.b16 %v250
  %v956 = vunpack.c.l.b16 %v251
  %v957 = vunpack.c.h.b16 %v251
  %v958 = vunpack.c.l.b16 %v252
  %v959 = vunpack.c.h.b16 %v252
  %v960 = vunpack.c.l.b16 %v253
  %v961 = vunpack.c.h.b16 %v253
  %v962 = vunpack.c.l.b16 %v254
  %v963 = vunpack.c.h.b16 %v254
  %v964 = vunpack.c.l.b16 %v255
  %v965 = vunpack.c.h.b16 %v255
  %v966 = vunpack.c.l.b16 %v256
  %v967 = vunpack.c.h.b16 %v256
  %v968 = vunpack.c.l.b16 %v257
  %v969 = vunpack.c.h.b16 %v257
  %v970 = vunpack.c.l.b16 %v258
  %v971 = vunpack.c.h.b16 %v258
  %v972 = vpack.c.b16 %v528, %v524
  %v973 = vpack.c.b16 %v529, %v525
  %v974 = vpack.c.b16 %v530, %v526
  %v975 = vpack.c.b16 %v531, %v527
  %v976 = vpack.c.b16 %v536, %v532
  %v977 = vpack.c.b16 %v537, %v533
  %v978 = vpack.c.b16 %v538, %v534
  %v979 = vpack.c.b16 %v539, %v535
  %v980 = vpack.c.b16 %v544, %v540
  %v981 = vpack.c.b16 %v545, %v541
  %v982 = vpack.c.b16 %v546, %v542
  %v983 = vpack.c.b16 %v547, %v543
  %v984 = vpack.c.b16 %v552, %v548
  %v985 = vpack.c.b16 %v553, %v549
  %v986 = vpack.c.b16 %v554, %v550
  %v987 = vpack.c.b16 %v555, %v551
  %v988 = vpack.c.b16 %v560, %v556
  %v989 = vpack.c.b16 %v561, %v557
  %v990 = vpack.c.b16 %v562, %v558
  %v991 = vpack.c.b16 %v563, %v559
  %v992 = vpack.c.b16 %v568, %v564
  %v993 = vpack.c.b16 %v569, %v565
  %v994 = vpack.c.b16 %v570, %v566
  %v995 = vpack.c.b16 %v571, %v567
  %v996 = vpack.c.b16 %v576, %v572
  %v997 = vpack.c.b16 %v577, %v573
  %v998 = vpack.c.b16 %v578, %v574
  %v999 = vpack.c.b16 %v579, %v575
  %v1000 = vpack.c.b16 %v584, %v580
  %v1001 = vpack.c.b16 %v585, %v581
  %v1002 = vpack.c.b16 %v586, %v582
  %v1003 = vpack.c.b16 %v587, %v583
  %v1004 = vpack.c.b16 %v592, %v588
  %v1005 = vpack.c.b16 %v593, %v589
  %v1006 = vpack.c.b16 %v594, %v590
  %v1007 = vpack.c.b16 %v595, %v591
  %v1008 = vpack.c.b16 %v600, %v596
  %v1009 = vpack.c.b16 %v601, %v597
  %v1010 = vpack.c.b16 %v602, %v598
  %v1011 = vpack.c.b16 %v603, %v599
  %v1012 = vpack.c.b16 %v608, %v604
  %v1013 = vpack.c.b16 %v609, %v605
  %v1014 = vpack.c.b16 %v610, %v606
  %v1015 = vpack.c.b16 %v611, %v607
  %v1016 = vpack.c.b16 %v616, %v612
  %v1017 = vpack.c.b16 %v617, %v613
  %v1018 = vpack.c.b16 %v618, %v614
  %v1019 = vpack.c.b16 %v619, %v615
  %v1020 = vpack.c.b16 %v624, %v620
  %v1021 = vpack.c.b16 %v625, %v621
  %v1022 = vpack.c.b16 %v626, %v622
  %v1023 = vpack.c.b16 %v627, %v623
  %v1024 = vpack.c.b16 %v632, %v628
  %v1025 = vpack.c.b16 %v633, %v629
  %v1026 = vpack.c.b16 %v634, %v630
  %v1027 = vpack.c.b16 %v635, %v631
  %v1028 = vpack.c.b16 %v640, %v636
  %v1029 = vpack.c.b16 %v641, %v637
  %v1030 = vpack.c.b16 %v642, %v638
  %v1031 = vpack.c.b16 %v643, %v639
  %v1032 = vpack.c.b16 %v648, %v644
  %v1033 = vpack.c.b16 %v649, %v645
  %v1034 = vpack.c.b16 %v650, %v646
  %v1035 = vpack.c.b16 %v651, %v647
  %v1036 = vpack.c.b16 %v656, %v652
  %v1037 = vpack.c.b16 %v657, %v653
  %v1038 = vpack.c.b16 %v658, %v654
  %v1039 = vpack.c.b16 %v659, %v655
  %v1040 = vpack.c.b16 %v664, %v660
  %v1041 = vpack.c.b16 %v665, %v661
  %v1042 = vpack.c.b16 %v666, %v662
  %v1043 = vpack.c.b16 %v667, %v663
  %v1044 = vpack.c.b16 %v672, %v668
  %v1045 = vpack.c.b16 %v673, %v669
  %v1046 = vpack.c.b16 %v674, %v670
  %v1047 = vpack.c.b16 %v675, %v671
  %v1048 = vpack.c.b16 %v680, %v676
  %v1049 = vpack.c.b16 %v681, %v677
  %v1050 = vpack.c.b16 %v682, %v678
  %v1051 = vpack.c.b16 %v683, %v679
  %v1052 = vpack.c.b16 %v688, %v684
  %v1053 = vpack.c.b16 %v689, %v685
  %v1054 = vpack.c.b16 %v690, %v686
  %v1055 = vpack.c.b16 %v691, %v687
  %v1056 = vpack.c.b16 %v696, %v692
  %v1057 = vpack.c.b16 %v697, %v693
  %v1058 = vpack.c.b16 %v698, %v694
  %v1059 = vpack.c.b16 %v699, %v695
  %v1060 = vpack.c.b16 %v704, %v700
  %v1061 = vpack.c.b16 %v705, %v701
  %v1062 = vpack.c.b16 %v706, %v702
  %v1063 = vpack.c.b16 %v707, %v703
  %v1064 = vpack.c.b16 %v712, %v708
  %v1065 = vpack.c.b16 %v713, %v709
  %v1066 = vpack.c.b16 %v714, %v710
  %v1067 = vpack.c.b16 %v715, %v711
  %v1068 = vpack.c.b16 %v720, %v716
  %v1069 = vpack.c.b16 %v721, %v717
  %v1070 = vpack.c.b16 %v722, %v718
  %v1071 = vpack.c.b16 %v723, %v719
  %v1072 = vpack.c.b16 %v728, %v724
  %v1073 = vpack.c.b16 %v729, %v725
  %v1074 = vpack.c.b16 %v730, %v726
  %v1075 = vpack.c.b16 %v731, %v727
  %v1076 = vpack.c.b16 %v736, %v732
  %v1077 = vpack.c.b16 %v737, %v733
  %v1078 = vpack.c.b16 %v738, %v734
  %v1079 = vpack.c.b16 %v739, %v735
  %v1080 = vpack.c.b16 %v744, %v740
  %v1081 = vpack.c.b16 %v745, %v741
  %v1082 = vpack.c.b16 %v746, %v742
  %v1083 = vpack.c.b16 %v747, %v743
  %v1084 = vpack.c.b16 %v752, %v748
  %v1085 = vpack.c.b16 %v753, %v749
  %v1086 = vpack.c.b16 %v754, %v750
  %v1087 = vpack.c.b16 %v755, %v751
  %v1088 = vpack.c.b16 %v760, %v756
  %v1089 = vpack.c.b16 %v761, %v757
  %v1090 = vpack.c.b16 %v762, %v758
  %v1091 = vpack.c.b16 %v763, %v759
  %v1092 = vpack.c.b16 %v768, %v764
  %v1093 = vpack.c.b16 %v769, %v765
  %v1094 = vpack.c.b16 %v770, %v766
  %v1095 = vpack.c.b16 %v771, %v767
  %v1096 = vpack.c.b16 %v776, %v772
  %v1097 = vpack.c.b16 %v777, %v773
  %v1098 = vpack.c.b16 %v778, %v774
  %v1099 = vpack.c.b16 %v779, %v775
  %v1100 = vpack.c.b16 %v784, %v780
  %v1101 = vpack.c.b16 %v785, %v781
  %v1102 = vpack.c.b16 %v786, %v782
  %v1103 = vpack.c.b16 %v787, %v783
  %v1104 = vpack.c.b16 %v792, %v788
  %v1105 = vpack.c.b16 %v793, %v789
  %v1106 = vpack.c.b16 %v794, %v790
  %v1107 = vpack.c.b16 %v795, %v791
  %v1108 = vpack.c.b16 %v800, %v796
  %v1109 = vpack.c.b16 %v801, %v797
  %v1110 = vpack.c.b16 %v802, %v798
  %v1111 = vpack.c.b16 %v803, %v799
  %v1112 = vpack.c.b16 %v808, %v804
  %v1113 = vpack.c.b16 %v809, %v805
  %v1114 = vpack.c.b16 %v810, %v806
  %v1115 = vpack.c.b16 %v811, %v807
  %v1116 = vpack.c.b16 %v816, %v812
  %v1117 = vpack.c.b16 %v817, %v813
  %v1118 = vpack.c.b16 %v818, %v814
  %v1119 = vpack.c.b16 %v819, %v815
  %v1120 = vpack.c.b16 %v824, %v820
  %v1121 = vpack.c.b16 %v825, %v821
  %v1122 = vpack.c.b16 %v826, %v822
  %v1123 = vpack.c.b16 %v827, %v823
  %v1124 = vpack.c.b16 %v832, %v828
  %v1125 = vpack.c.b16 %v833, %v829
  %v1126 = vpack.c.b16 %v834, %v830
  %v1127 = vpack.c.b16 %v835, %v831
  %v1128 = vpack.c.b16 %v840, %v836
  %v1129 = vpack.c.b16 %v841, %v837
  %v1130 = vpack.c.b16 %v842, %v838
  %v1131 = vpack.c.b16 %v843, %v839
  %v1132 = vpack.c.b16 %v848, %v844
  %v1133 = vpack.c.b16 %v849, %v845
  %v1134 = vpack.c.b16 %v850, %v846
  %v1135 = vpack.c.b16 %v851, %v847
  %v1136 = vpack.c.b16 %v856, %v852
  %v1137 = vpack.c.b16 %v857, %v853
  %v1138 = vpack.c.b16 %v858, %v854
  %v1139 = vpack.c.b16 %v859, %v855
  %v1140 = vpack.c.b16 %v864, %v860
  %v1141 = vpack.c.b16 %v865, %v861
  %v1142 = vpack.c.b16 %v866, %v862
  %v1143 = vpack.c.b16 %v867, %v863
  %v1144 = vpack.c.b16 %v872, %v868
  %v1145 = vpack.c.b16 %v873, %v869
  %v1146 = vpack.c.b16 %v874, %v870
  %v1147 = vpack.c.b16 %v875, %v871
  %v1148 = vpack.c.b16 %v880, %v876
  %v1149 = vpack.c.b16 %v881, %v877
  %v1150 = vpack.c.b16 %v882, %v878
  %v1151 = vpack.c.b16 %v883, %v879
  %v1152 = vpack.c.b16 %v888, %v884
  %v1153 = vpack.c.b16 %v889, %v885
  %v1154 = vpack.c.b16 %v890, %v886
  %v1155 = vpack.c.b16 %v891, %v887
  %v1156 = vpack.c.b16 %v896, %v892
  %v1157 = vpack.c.b16 %v897, %v893
  %v1158 = vpack.c.b16 %v898, %v894
  %v1159 = vpack.c.b16 %v899, %v895
  %v1160 = vpack.c.b16 %v904, %v900
  %v1161 = vpack.c.b16 %v905, %v901
  %v1162 = vpack.c.b16 %v906, %v902
  %v1163 = vpack.c.b16 %v907, %v903
  %v1164 = vpack.c.b16 %v912, %v908
  %v1165 = vpack.c.b16 %v913, %v909
  %v1166 = vpack.c.b16 %v914, %v910
  %v1167 = vpack.c.b16 %v915, %v911
  %v1168 = vpack.c.b16 %v920, %v916
  %v1169 = vpack.c.b16 %v921, %v917
  %v1170 = vpack.c.b16 %v922, %v918
  %v1171 = vpack.c.b16 %v923, %v919
  %v1172 = vpack.c.b16 %v928, %v924
  %v1173 = vpack.c.b16 %v929, %v925
  %v1174 = vpack.c.b16 %v930, %v926
  %v1175 = vpack.c.b16 %v931, %v927
  %v1176 = vpack.c.b16 %v936, %v932
  %v1177 = vpack.c.b16 %v937, %v933
  %v1178 = vpack.c.b16 %v938, %v934
  %v1179 = vpack.c.b16 %v939, %v935
  %v1180 = vpack.c.b16 %v944, %v940
  %v1181 = vpack.c.b16 %v945, %v941
  %v1182 = vpack.c.b16 %v946, %v942
  %v1183 = vpack.c.b16 %v947, %v943
  %v1184 = vpack.c.b16 %v952, %v948
  %v1185 = vpack.c.b16 %v953, %v949
  %v1186 = vpack.c.b16 %v954, %v950
  %v1187 = vpack.c.b16 %v955, %v951
  %v1188 = vpack.c.b16 %v960, %v956
  %v1189 = vpack.c.b16 %v961, %v957
  %v1190 = vpack.c.b16 %v962, %v958
  %v1191 = vpack.c.b16 %v963, %v959
  %v1192 = vpack.c.b16 %v968, %v964
  %v1193 = vpack.c.b16 %v969, %v965
  %v1194 = vpack.c.b16 %v970, %v966
  %v1195 = vpack.c.b16 %v971, %v967
  %1420 = vmatprep.subr.bf16.mxu0 %v1001
  %1421 = vmatpush1.bf16.msra.mxu0 %v1000
  %1422 = vmatprep.subr.bf16.mxu0 %v997
  %1423 = vmatpush1.bf16.msra.mxu0 %v996
  %1424 = vmatprep.subr.bf16.mxu0 %v993
  %1425 = vmatpush1.bf16.msra.mxu0 %v992
  %1426 = vmatprep.subr.bf16.mxu0 %v989
  %1427 = vmatpush1.bf16.msra.mxu0 %v988
  %1428 = vmatprep.subr.bf16.mxu0 %v985
  %1429 = vmatpush1.bf16.msra.mxu0 %v984
  %1430 = vmatprep.subr.bf16.mxu0 %v981
  %1431 = vmatpush1.bf16.msra.mxu0 %v980
  %1432 = vmatprep.subr.bf16.mxu0 %v977
  %1433 = vmatpush1.bf16.msra.mxu0 %v976
  %1434 = vmatprep.subr.bf16.mxu0 %v973
  %1435 = vmatpush1.bf16.msra.mxu0 %v972
  %1436 = vmatprep.subr.bf16.mxu0 %v1033
  %1437 = vmatpush2.bf16.msra.mxu0 %v1032
  %1438 = vmatprep.subr.bf16.mxu0 %v1029
  %1439 = vmatpush2.bf16.msra.mxu0 %v1028
  %1440 = vmatprep.subr.bf16.mxu0 %v1025
  %1441 = vmatpush2.bf16.msra.mxu0 %v1024
  %1442 = vmatprep.subr.bf16.mxu0 %v1021
  %1443 = vmatpush2.bf16.msra.mxu0 %v1020
  %1444 = vmatprep.subr.bf16.mxu0 %v1017
  %1445 = vmatpush2.bf16.msra.mxu0 %v1016
  %1446 = vmatprep.subr.bf16.mxu0 %v1013
  %1447 = vmatpush2.bf16.msra.mxu0 %v1012
  %1448 = vmatprep.subr.bf16.mxu0 %v1009
  %1449 = vmatpush2.bf16.msra.mxu0 %v1008
  %1450 = vmatprep.subr.bf16.mxu0 %v1005
  %1451 = vmatpush2.bf16.msra.mxu0 %v1004
  %1452 = vmatprep.mubr.bf16.mxu0 %v287
  %1453 = vmatmul.mubr.bf16.gmra.mxu0 %v286
  %v1454 = vpop.f32.mrf.mxu0
  %v1455 = vadd.f32 %v262, %v1454
  %v1456 = vpop.f32.mrf.mxu0
  %v1457 = vadd.f32 %v266, %v1456
  %v1458 = vpop.f32.mrf.mxu0
  %v1459 = vpop.f32.mrf.mxu0
  %1460 = vdwg.mxu0
  %1461 = vmatprep.subr.bf16.mxu0 %v1065
  %1462 = vmatpush1.bf16.msra.mxu0 %v1064
  %1463 = vmatprep.subr.bf16.mxu0 %v1061
  %1464 = vmatpush1.bf16.msra.mxu0 %v1060
  %1465 = vmatprep.subr.bf16.mxu0 %v1057
  %1466 = vmatpush1.bf16.msra.mxu0 %v1056
  %1467 = vmatprep.subr.bf16.mxu0 %v1053
  %1468 = vmatpush1.bf16.msra.mxu0 %v1052
  %1469 = vmatprep.subr.bf16.mxu0 %v1049
  %1470 = vmatpush1.bf16.msra.mxu0 %v1048
  %1471 = vmatprep.subr.bf16.mxu0 %v1045
  %1472 = vmatpush1.bf16.msra.mxu0 %v1044
  %1473 = vmatprep.subr.bf16.mxu0 %v1041
  %1474 = vmatpush1.bf16.msra.mxu0 %v1040
  %1475 = vmatprep.subr.bf16.mxu0 %v1037
  %1476 = vmatpush1.bf16.msra.mxu0 %v1036
  %1477 = vmatprep.subr.bf16.mxu0 %v1097
  %1478 = vmatpush2.bf16.msra.mxu0 %v1096
  %1479 = vmatprep.subr.bf16.mxu0 %v1093
  %1480 = vmatpush2.bf16.msra.mxu0 %v1092
  %1481 = vmatprep.subr.bf16.mxu0 %v1089
  %1482 = vmatpush2.bf16.msra.mxu0 %v1088
  %1483 = vmatprep.subr.bf16.mxu0 %v1085
  %1484 = vmatpush2.bf16.msra.mxu0 %v1084
  %1485 = vmatprep.subr.bf16.mxu0 %v1081
  %1486 = vmatpush2.bf16.msra.mxu0 %v1080
  %1487 = vmatprep.subr.bf16.mxu0 %v1077
  %1488 = vmatpush2.bf16.msra.mxu0 %v1076
  %1489 = vmatprep.subr.bf16.mxu0 %v1073
  %1490 = vmatpush2.bf16.msra.mxu0 %v1072
  %1491 = vmatprep.subr.bf16.mxu0 %v1069
  %1492 = vmatpush2.bf16.msra.mxu0 %v1068
  %1493 = vmatprep.mubr.bf16.mxu0 %v289
  %1494 = vmatmul.mubr.bf16.gmra.mxu0 %v288
  %v1495 = vpop.f32.mrf.mxu0
  %v1496 = vadd.f32 %v1455, %v1495
  %v1497 = vpop.f32.mrf.mxu0
  %v1498 = vadd.f32 %v1457, %v1497
  %v1499 = vpop.f32.mrf.mxu0
  %v1500 = vpop.f32.mrf.mxu0
  %1501 = vdwg.mxu0
  %1502 = vmatprep.subr.bf16.mxu0 %v1129
  %1503 = vmatpush1.bf16.msra.mxu0 %v1128
  %1504 = vmatprep.subr.bf16.mxu0 %v1125
  %1505 = vmatpush1.bf16.msra.mxu0 %v1124
  %1506 = vmatprep.subr.bf16.mxu0 %v1121
  %1507 = vmatpush1.bf16.msra.mxu0 %v1120
  %1508 = vmatprep.subr.bf16.mxu0 %v1117
  %1509 = vmatpush1.bf16.msra.mxu0 %v1116
  %1510 = vmatprep.subr.bf16.mxu0 %v1113
  %1511 = vmatpush1.bf16.msra.mxu0 %v1112
  %1512 = vmatprep.subr.bf16.mxu0 %v1109
  %1513 = vmatpush1.bf16.msra.mxu0 %v1108
  %1514 = vmatprep.subr.bf16.mxu0 %v1105
  %1515 = vmatpush1.bf16.msra.mxu0 %v1104
  %1516 = vmatprep.subr.bf16.mxu0 %v1101
  %1517 = vmatpush1.bf16.msra.mxu0 %v1100
  %1518 = vmatprep.subr.bf16.mxu0 %v1161
  %1519 = vmatpush2.bf16.msra.mxu0 %v1160
  %1520 = vmatprep.subr.bf16.mxu0 %v1157
  %1521 = vmatpush2.bf16.msra.mxu0 %v1156
  %1522 = vmatprep.subr.bf16.mxu0 %v1153
  %1523 = vmatpush2.bf16.msra.mxu0 %v1152
  %1524 = vmatprep.subr.bf16.mxu0 %v1149
  %1525 = vmatpush2.bf16.msra.mxu0 %v1148
  %1526 = vmatprep.subr.bf16.mxu0 %v1145
  %1527 = vmatpush2.bf16.msra.mxu0 %v1144
  %1528 = vmatprep.subr.bf16.mxu0 %v1141
  %1529 = vmatpush2.bf16.msra.mxu0 %v1140
  %1530 = vmatprep.subr.bf16.mxu0 %v1137
  %1531 = vmatpush2.bf16.msra.mxu0 %v1136
  %1532 = vmatprep.subr.bf16.mxu0 %v1133
  %1533 = vmatpush2.bf16.msra.mxu0 %v1132
  %1534 = vmatprep.mubr.bf16.mxu0 %v291
  %1535 = vmatmul.mubr.bf16.gmra.mxu0 %v290
  %v1536 = vpop.f32.mrf.mxu0
  %v1537 = vadd.f32 %v1496, %v1536
  %v1538 = vpop.f32.mrf.mxu0
  %v1539 = vadd.f32 %v1498, %v1538
  %v1540 = vpop.f32.mrf.mxu0
  %v1541 = vpop.f32.mrf.mxu0
  %1542 = vdwg.mxu0
  %1543 = vmatprep.subr.bf16.mxu0 %v1193
  %1544 = vmatpush1.bf16.msra.mxu0 %v1192
  %1545 = vmatprep.subr.bf16.mxu0 %v1189
  %1546 = vmatpush1.bf16.msra.mxu0 %v1188
  %1547 = vmatprep.subr.bf16.mxu0 %v1185
  %1548 = vmatpush1.bf16.msra.mxu0 %v1184
  %1549 = vmatprep.subr.bf16.mxu0 %v1181
  %1550 = vmatpush1.bf16.msra.mxu0 %v1180
  %1551 = vmatprep.subr.bf16.mxu0 %v1177
  %1552 = vmatpush1.bf16.msra.mxu0 %v1176
  %1553 = vmatprep.subr.bf16.mxu0 %v1173
  %1554 = vmatpush1.bf16.msra.mxu0 %v1172
  %1555 = vmatprep.subr.bf16.mxu0 %v1169
  %1556 = vmatpush1.bf16.msra.mxu0 %v1168
  %1557 = vmatprep.subr.bf16.mxu0 %v1165
  %1558 = vmatpush1.bf16.msra.mxu0 %v1164
  %1559 = vmatprep.subr.bf16.mxu0 0
  %1560 = vmatpush2.bf16.msra.mxu0 0
  %1561 = vmatprep.subr.bf16.mxu0 0
  %1562 = vmatpush2.bf16.msra.mxu0 0
  %1563 = vmatprep.subr.bf16.mxu0 0
  %1564 = vmatpush2.bf16.msra.mxu0 0
  %1565 = vmatprep.subr.bf16.mxu0 0
  %1566 = vmatpush2.bf16.msra.mxu0 0
  %1567 = vmatprep.subr.bf16.mxu0 0
  %1568 = vmatpush2.bf16.msra.mxu0 0
  %1569 = vmatprep.subr.bf16.mxu0 0
  %1570 = vmatpush2.bf16.msra.mxu0 0
  %1571 = vmatprep.subr.bf16.mxu0 0
  %1572 = vmatpush2.bf16.msra.mxu0 0
  %1573 = vmatprep.subr.bf16.mxu0 0
  %1574 = vmatpush2.bf16.msra.mxu0 0
  %1575 = vmatprep.mubr.bf16.mxu0 0
  %1576 = vmatmul.mubr.bf16.gmra.mxu0 %v292
  %v1577 = vpop.f32.mrf.mxu0
  %v1578 = vadd.f32 %v1537, %v1577
  %v1579 = vpop.f32.mrf.mxu0
  %v1580 = vadd.f32 %v1539, %v1579
  %v1581 = vpop.f32.mrf.mxu0
  %v1582 = vpop.f32.mrf.mxu0
  %1583 = vdwg.mxu0
  %1584 = vmatprep.subr.bf16.mxu0 %v1003
  %1585 = vmatpush1.bf16.msra.mxu0 %v1002
  %1586 = vmatprep.subr.bf16.mxu0 %v999
  %1587 = vmatpush1.bf16.msra.mxu0 %v998
  %1588 = vmatprep.subr.bf16.mxu0 %v995
  %1589 = vmatpush1.bf16.msra.mxu0 %v994
  %1590 = vmatprep.subr.bf16.mxu0 %v991
  %1591 = vmatpush1.bf16.msra.mxu0 %v990
  %1592 = vmatprep.subr.bf16.mxu0 %v987
  %1593 = vmatpush1.bf16.msra.mxu0 %v986
  %1594 = vmatprep.subr.bf16.mxu0 %v983
  %1595 = vmatpush1.bf16.msra.mxu0 %v982
  %1596 = vmatprep.subr.bf16.mxu0 %v979
  %1597 = vmatpush1.bf16.msra.mxu0 %v978
  %1598 = vmatprep.subr.bf16.mxu0 %v975
  %1599 = vmatpush1.bf16.msra.mxu0 %v974
  %1600 = vmatprep.subr.bf16.mxu0 %v1035
  %1601 = vmatpush2.bf16.msra.mxu0 %v1034
  %1602 = vmatprep.subr.bf16.mxu0 %v1031
  %1603 = vmatpush2.bf16.msra.mxu0 %v1030
  %1604 = vmatprep.subr.bf16.mxu0 %v1027
  %1605 = vmatpush2.bf16.msra.mxu0 %v1026
  %1606 = vmatprep.subr.bf16.mxu0 %v1023
  %1607 = vmatpush2.bf16.msra.mxu0 %v1022
  %1608 = vmatprep.subr.bf16.mxu0 %v1019
  %1609 = vmatpush2.bf16.msra.mxu0 %v1018
  %1610 = vmatprep.subr.bf16.mxu0 %v1015
  %1611 = vmatpush2.bf16.msra.mxu0 %v1014
  %1612 = vmatprep.subr.bf16.mxu0 %v1011
  %1613 = vmatpush2.bf16.msra.mxu0 %v1010
  %1614 = vmatprep.subr.bf16.mxu0 %v1007
  %1615 = vmatpush2.bf16.msra.mxu0 %v1006
  %1616 = vmatprep.mubr.bf16.mxu0 %v287
  %1617 = vmatmul.mubr.bf16.gmra.mxu0 %v286
  %v1618 = vpop.f32.mrf.mxu0
  %v1619 = vadd.f32 %v270, %v1618
  %v1620 = vpop.f32.mrf.mxu0
  %v1621 = vadd.f32 %v274, %v1620
  %v1622 = vpop.f32.mrf.mxu0
  %v1623 = vpop.f32.mrf.mxu0
  %1624 = vdwg.mxu0
  %1625 = vmatprep.subr.bf16.mxu0 %v1067
  %1626 = vmatpush1.bf16.msra.mxu0 %v1066
  %1627 = vmatprep.subr.bf16.mxu0 %v1063
  %1628 = vmatpush1.bf16.msra.mxu0 %v1062
  %1629 = vmatprep.subr.bf16.mxu0 %v1059
  %1630 = vmatpush1.bf16.msra.mxu0 %v1058
  %1631 = vmatprep.subr.bf16.mxu0 %v1055
  %1632 = vmatpush1.bf16.msra.mxu0 %v1054
  %1633 = vmatprep.subr.bf16.mxu0 %v1051
  %1634 = vmatpush1.bf16.msra.mxu0 %v1050
  %1635 = vmatprep.subr.bf16.mxu0 %v1047
  %1636 = vmatpush1.bf16.msra.mxu0 %v1046
  %1637 = vmatprep.subr.bf16.mxu0 %v1043
  %1638 = vmatpush1.bf16.msra.mxu0 %v1042
  %1639 = vmatprep.subr.bf16.mxu0 %v1039
  %1640 = vmatpush1.bf16.msra.mxu0 %v1038
  %1641 = vmatprep.subr.bf16.mxu0 %v1099
  %1642 = vmatpush2.bf16.msra.mxu0 %v1098
  %1643 = vmatprep.subr.bf16.mxu0 %v1095
  %1644 = vmatpush2.bf16.msra.mxu0 %v1094
  %1645 = vmatprep.subr.bf16.mxu0 %v1091
  %1646 = vmatpush2.bf16.msra.mxu0 %v1090
  %1647 = vmatprep.subr.bf16.mxu0 %v1087
  %1648 = vmatpush2.bf16.msra.mxu0 %v1086
  %1649 = vmatprep.subr.bf16.mxu0 %v1083
  %1650 = vmatpush2.bf16.msra.mxu0 %v1082
  %1651 = vmatprep.subr.bf16.mxu0 %v1079
  %1652 = vmatpush2.bf16.msra.mxu0 %v1078
  %1653 = vmatprep.subr.bf16.mxu0 %v1075
  %1654 = vmatpush2.bf16.msra.mxu0 %v1074
  %1655 = vmatprep.subr.bf16.mxu0 %v1071
  %1656 = vmatpush2.bf16.msra.mxu0 %v1070
  %1657 = vmatprep.mubr.bf16.mxu0 %v289
  %1658 = vmatmul.mubr.bf16.gmra.mxu0 %v288
  %v1659 = vpop.f32.mrf.mxu0
  %v1660 = vadd.f32 %v1619, %v1659
  %v1661 = vpop.f32.mrf.mxu0
  %v1662 = vadd.f32 %v1621, %v1661
  %v1663 = vpop.f32.mrf.mxu0
  %v1664 = vpop.f32.mrf.mxu0
  %1665 = vdwg.mxu0
  %1666 = vmatprep.subr.bf16.mxu0 %v1131
  %1667 = vmatpush1.bf16.msra.mxu0 %v1130
  %1668 = vmatprep.subr.bf16.mxu0 %v1127
  %1669 = vmatpush1.bf16.msra.mxu0 %v1126
  %1670 = vmatprep.subr.bf16.mxu0 %v1123
  %1671 = vmatpush1.bf16.msra.mxu0 %v1122
  %1672 = vmatprep.subr.bf16.mxu0 %v1119
  %1673 = vmatpush1.bf16.msra.mxu0 %v1118
  %1674 = vmatprep.subr.bf16.mxu0 %v1115
  %1675 = vmatpush1.bf16.msra.mxu0 %v1114
  %1676 = vmatprep.subr.bf16.mxu0 %v1111
  %1677 = vmatpush1.bf16.msra.mxu0 %v1110
  %1678 = vmatprep.subr.bf16.mxu0 %v1107
  %1679 = vmatpush1.bf16.msra.mxu0 %v1106
  %1680 = vmatprep.subr.bf16.mxu0 %v1103
  %1681 = vmatpush1.bf16.msra.mxu0 %v1102
  %1682 = vmatprep.subr.bf16.mxu0 %v1163
  %1683 = vmatpush2.bf16.msra.mxu0 %v1162
  %1684 = vmatprep.subr.bf16.mxu0 %v1159
  %1685 = vmatpush2.bf16.msra.mxu0 %v1158
  %1686 = vmatprep.subr.bf16.mxu0 %v1155
  %1687 = vmatpush2.bf16.msra.mxu0 %v1154
  %1688 = vmatprep.subr.bf16.mxu0 %v1151
  %1689 = vmatpush2.bf16.msra.mxu0 %v1150
  %1690 = vmatprep.subr.bf16.mxu0 %v1147
  %1691 = vmatpush2.bf16.msra.mxu0 %v1146
  %1692 = vmatprep.subr.bf16.mxu0 %v1143
  %1693 = vmatpush2.bf16.msra.mxu0 %v1142
  %1694 = vmatprep.subr.bf16.mxu0 %v1139
  %1695 = vmatpush2.bf16.msra.mxu0 %v1138
  %1696 = vmatprep.subr.bf16.mxu0 %v1135
  %1697 = vmatpush2.bf16.msra.mxu0 %v1134
  %1698 = vmatprep.mubr.bf16.mxu0 %v291
  %1699 = vmatmul.mubr.bf16.gmra.mxu0 %v290
  %v1700 = vpop.f32.mrf.mxu0
  %v1701 = vadd.f32 %v1660, %v1700
  %v1702 = vpop.f32.mrf.mxu0
  %v1703 = vadd.f32 %v1662, %v1702
  %v1704 = vpop.f32.mrf.mxu0
  %v1705 = vpop.f32.mrf.mxu0
  %1706 = vdwg.mxu0
  %1707 = vmatprep.subr.bf16.mxu0 %v1195
  %1708 = vmatpush1.bf16.msra.mxu0 %v1194
  %1709 = vmatprep.subr.bf16.mxu0 %v1191
  %1710 = vmatpush1.bf16.msra.mxu0 %v1190
  %1711 = vmatprep.subr.bf16.mxu0 %v1187
  %1712 = vmatpush1.bf16.msra.mxu0 %v1186
  %1713 = vmatprep.subr.bf16.mxu0 %v1183
  %1714 = vmatpush1.bf16.msra.mxu0 %v1182
  %1715 = vmatprep.subr.bf16.mxu0 %v1179
  %1716 = vmatpush1.bf16.msra.mxu0 %v1178
  %1717 = vmatprep.subr.bf16.mxu0 %v1175
  %1718 = vmatpush1.bf16.msra.mxu0 %v1174
  %1719 = vmatprep.subr.bf16.mxu0 %v1171
  %1720 = vmatpush1.bf16.msra.mxu0 %v1170
  %1721 = vmatprep.subr.bf16.mxu0 %v1167
  %1722 = vmatpush1.bf16.msra.mxu0 %v1166
  %1723 = vmatprep.subr.bf16.mxu0 0
  %1724 = vmatpush2.bf16.msra.mxu0 0
  %1725 = vmatprep.subr.bf16.mxu0 0
  %1726 = vmatpush2.bf16.msra.mxu0 0
  %1727 = vmatprep.subr.bf16.mxu0 0
  %1728 = vmatpush2.bf16.msra.mxu0 0
  %1729 = vmatprep.subr.bf16.mxu0 0
  %1730 = vmatpush2.bf16.msra.mxu0 0
  %1731 = vmatprep.subr.bf16.mxu0 0
  %1732 = vmatpush2.bf16.msra.mxu0 0
  %1733 = vmatprep.subr.bf16.mxu0 0
  %1734 = vmatpush2.bf16.msra.mxu0 0
  %1735 = vmatprep.subr.bf16.mxu0 0
  %1736 = vmatpush2.bf16.msra.mxu0 0
  %1737 = vmatprep.subr.bf16.mxu0 0
  %1738 = vmatpush2.bf16.msra.mxu0 0
  %1739 = vmatprep.mubr.bf16.mxu0 0
  %1740 = vmatmul.mubr.bf16.gmra.mxu0 %v292
  %v1741 = vpop.f32.mrf.mxu0
  %v1742 = vadd.f32 %v1701, %v1741
  %v1743 = vpop.f32.mrf.mxu0
  %v1744 = vadd.f32 %v1703, %v1743
  %v1745 = vpop.f32.mrf.mxu0
  %v1746 = vpop.f32.mrf.mxu0
  %1747 = vdwg.mxu0
  %v1748 = vmul.f32 %v1578, %v1578
  %v1749 = vmul.f32 %v1580, %v1580
  %v1750 = vmul.f32 %v1742, %v1742
  %v1751 = vmul.f32 %v1744, %v1744
  %v1752 = vmul.f32 %v1578, %v1748
  %v1753 = vmul.f32 %v1580, %v1749
  %v1754 = vmul.f32 %v1742, %v1750
  %v1755 = vmul.f32 %v1744, %v1751
  %v1756 = vmul.f32 %v1752, 0.044715
  %v1757 = vmul.f32 %v1753, 0.044715
  %v1758 = vmul.f32 %v1754, 0.044715
  %v1759 = vmul.f32 %v1755, 0.044715
  %v1760 = vadd.f32 %v1578, %v1756
  %v1761 = vadd.f32 %v1580, %v1757
  %v1762 = vadd.f32 %v1742, %v1758
  %v1763 = vadd.f32 %v1744, %v1759
  %v1764 = vmul.f32 %v1760, 0.7978846
  %v1765 = vmul.f32 %v1761, 0.7978846
  %v1766 = vmul.f32 %v1762, 0.7978846
  %v1767 = vmul.f32 %v1763, 0.7978846
  %v1768 = vtanh.pop %v1764
  %v1769 = vtanh.pop %v1765
  %v1770 = vtanh.pop %v1766
  %v1771 = vtanh.pop %v1767
  %v1772 = vadd.f32 %v1768, 1.0
  %v1773 = vadd.f32 %v1769, 1.0
  %v1774 = vadd.f32 %v1770, 1.0
  %v1775 = vadd.f32 %v1771, 1.0
  %v1776 = vmul.f32 %v1772, 0.5
  %v1777 = vmul.f32 %v1773, 0.5
  %v1778 = vmul.f32 %v1774, 0.5
  %v1779 = vmul.f32 %v1775, 0.5
  %v1780 = vmul.f32 %v1578, %v1776
  %v1781 = vmul.f32 %v1580, %v1777
  %v1782 = vmul.f32 %v1742, %v1778
  %v1783 = vmul.f32 %v1744, %v1779
  %v1784 = vpack.c.bf16 %v1780, %v1780
  %v1785 = vpack.c.bf16 %v1781, %v1781
  %v1786 = vpack.c.bf16 %v1782, %v1782
  %v1787 = vpack.c.bf16 %v1783, %v1783
  %v1788 = vld [vmem:[%s2] sm:$0xff]
  %v1789 = vld [vmem:[%s2 + $0x8] sm:$0xff]
  %v1790 = vld [vmem:[%s2 + $0x10] sm:$0xff]
  %v1791 = vld [vmem:[%s2 + $0x18] sm:$0xff]
  %v1792 = vld [vmem:[%s2 + $0x20] sm:$0xff]
  %v1793 = vld [vmem:[%s2 + $0x28] sm:$0xff]
  %v1794 = vld [vmem:[%s2 + $0x30] sm:$0xff]
  %v1795 = vld [vmem:[%s2 + $0x38] sm:$0xff]
  %v1796 = vld [vmem:[%s2 + $0x40] sm:$0xff]
  %v1797 = vld [vmem:[%s2 + $0x48] sm:$0xff]
  %v1798 = vld [vmem:[%s2 + $0x50] sm:$0xff]
  %v1799 = vld [vmem:[%s2 + $0x58] sm:$0xff]
  %v1800 = vld [vmem:[%s2 + $0x60] sm:$0xff]
  %v1801 = vld [vmem:[%s2 + $0x68] sm:$0xff]
  %v1802 = vld [vmem:[%s2 + $0x70] sm:$0xff]
  %v1803 = vld [vmem:[%s2 + $0x78] sm:$0xff]
  %v1804 = vld [vmem:[%s2 + $0x80] sm:$0xff]
  %v1805 = vld [vmem:[%s2 + $0x88] sm:$0xff]
  %v1806 = vld [vmem:[%s2 + $0x90] sm:$0xff]
  %v1807 = vld [vmem:[%s2 + $0x98] sm:$0xff]
  %v1808 = vld [vmem:[%s2 + $0xa0] sm:$0xff]
  %v1809 = vld [vmem:[%s2 + $0xa8] sm:$0xff]
  %v1810 = vld [vmem:[%s2 + $0xb0] sm:$0xff]
  %v1811 = vld [vmem:[%s2 + $0xb8] sm:$0xff]
  %v1812 = vld [vmem:[%s2 + $0xc0] sm:$0xff]
  %v1813 = vld [vmem:[%s2 + $0xc8] sm:$0xff]
  %v1814 = vld [vmem:[%s2 + $0xd0] sm:$0xff]
  %v1815 = vld [vmem:[%s2 + $0xd8] sm:$0xff]
  %v1816 = vld [vmem:[%s2 + $0xe0] sm:$0xff]
  %v1817 = vld [vmem:[%s2 + $0xe8] sm:$0xff]
  %v1818 = vld [vmem:[%s2 + $0xf0] sm:$0xff]
  %v1819 = vld [vmem:[%s2 + $0xf8] sm:$0xff]
  %v1820 = vld [vmem:[%s2 + $0x100] sm:$0xff]
  %v1821 = vld [vmem:[%s2 + $0x108] sm:$0xff]
  %v1822 = vld [vmem:[%s2 + $0x110] sm:$0xff]
  %v1823 = vld [vmem:[%s2 + $0x118] sm:$0xff]
  %v1824 = vld [vmem:[%s2 + $0x120] sm:$0xff]
  %v1825 = vld [vmem:[%s2 + $0x128] sm:$0xff]
  %v1826 = vld [vmem:[%s2 + $0x130] sm:$0xff]
  %v1827 = vld [vmem:[%s2 + $0x138] sm:$0xff]
  %v1828 = vld [vmem:[%s2 + $0x140] sm:$0xff]
  %v1829 = vld [vmem:[%s2 + $0x148] sm:$0xff]
  %v1830 = vld [vmem:[%s2 + $0x150] sm:$0xff]
  %v1831 = vld [vmem:[%s2 + $0x158] sm:$0xff]
  %v1832 = vld [vmem:[%s2 + $0x160] sm:$0xff]
  %v1833 = vld [vmem:[%s2 + $0x168] sm:$0xff]
  %v1834 = vld [vmem:[%s2 + $0x170] sm:$0xff]
  %v1835 = vld [vmem:[%s2 + $0x178] sm:$0xff]
  %v1836 = vld [vmem:[%s2 + $0x180] sm:$0xff]
  %v1837 = vld [vmem:[%s2 + $0x188] sm:$0xff]
  %v1838 = vld [vmem:[%s2 + $0x190] sm:$0xff]
  %v1839 = vld [vmem:[%s2 + $0x198] sm:$0xff]
  %v1840 = vld [vmem:[%s2 + $0x1a0] sm:$0xff]
  %v1841 = vld [vmem:[%s2 + $0x1a8] sm:$0xff]
  %v1842 = vld [vmem:[%s2 + $0x1b0] sm:$0xff]
  %v1843 = vld [vmem:[%s2 + $0x1b8] sm:$0xff]
  %v1844 = vld [vmem:[%s2 + $0x1c0] sm:$0xff]
  %v1845 = vld [vmem:[%s2 + $0x1c8] sm:$0xff]
  %v1846 = vld [vmem:[%s2 + $0x1d0] sm:$0xff]
  %v1847 = vld [vmem:[%s2 + $0x1d8] sm:$0xff]
  %v1848 = vld [vmem:[%s2 + $0x1e0] sm:$0xff]
  %v1849 = vld [vmem:[%s2 + $0x1e8] sm:$0xff]
  %v1850 = vld [vmem:[%s2 + $0x1f0] sm:$0xff]
  %v1851 = vld [vmem:[%s2 + $0x1f8] sm:$0xff]
  %v1852 = vlaneseq
  %v1853 = vshrl.u32 %v1852, 7
  %v1854 = vsub.s32 1, %v1853
  %v1855 = vrot.slane %v27, %v1854
  %v1856 = vlaneseq
  %v1857 = vshrl.u32 %v1856, 7
  %v1858 = vsub.s32 1, %v1857
  %v1859 = vrot.slane %v28, %v1858
  %v1924 = vunpack.c.l.b16 %v1788
  %v1925 = vunpack.c.h.b16 %v1788
  %v1926 = vunpack.c.l.b16 %v1789
  %v1927 = vunpack.c.h.b16 %v1789
  %v1928 = vunpack.c.l.b16 %v1790
  %v1929 = vunpack.c.h.b16 %v1790
  %v1930 = vunpack.c.l.b16 %v1791
  %v1931 = vunpack.c.h.b16 %v1791
  %v1932 = vunpack.c.l.b16 %v1792
  %v1933 = vunpack.c.h.b16 %v1792
  %v1934 = vunpack.c.l.b16 %v1793
  %v1935 = vunpack.c.h.b16 %v1793
  %v1936 = vunpack.c.l.b16 %v1794
  %v1937 = vunpack.c.h.b16 %v1794
  %v1938 = vunpack.c.l.b16 %v1795
  %v1939 = vunpack.c.h.b16 %v1795
  %v1940 = vunpack.c.l.b16 %v1796
  %v1941 = vunpack.c.h.b16 %v1796
  %v1942 = vunpack.c.l.b16 %v1797
  %v1943 = vunpack.c.h.b16 %v1797
  %v1944 = vunpack.c.l.b16 %v1798
  %v1945 = vunpack.c.h.b16 %v1798
  %v1946 = vunpack.c.l.b16 %v1799
  %v1947 = vunpack.c.h.b16 %v1799
  %v1948 = vunpack.c.l.b16 %v1800
  %v1949 = vunpack.c.h.b16 %v1800
  %v1950 = vunpack.c.l.b16 %v1801
  %v1951 = vunpack.c.h.b16 %v1801
  %v1952 = vunpack.c.l.b16 %v1802
  %v1953 = vunpack.c.h.b16 %v1802
  %v1954 = vunpack.c.l.b16 %v1803
  %v1955 = vunpack.c.h.b16 %v1803
  %v1956 = vunpack.c.l.b16 %v1804
  %v1957 = vunpack.c.h.b16 %v1804
  %v1958 = vunpack.c.l.b16 %v1805
  %v1959 = vunpack.c.h.b16 %v1805
  %v1960 = vunpack.c.l.b16 %v1806
  %v1961 = vunpack.c.h.b16 %v1806
  %v1962 = vunpack.c.l.b16 %v1807
  %v1963 = vunpack.c.h.b16 %v1807
  %v1964 = vunpack.c.l.b16 %v1808
  %v1965 = vunpack.c.h.b16 %v1808
  %v1966 = vunpack.c.l.b16 %v1809
  %v1967 = vunpack.c.h.b16 %v1809
  %v1968 = vunpack.c.l.b16 %v1810
  %v1969 = vunpack.c.h.b16 %v1810
  %v1970 = vunpack.c.l.b16 %v1811
  %v1971 = vunpack.c.h.b16 %v1811
  %v1972 = vunpack.c.l.b16 %v1812
  %v1973 = vunpack.c.h.b16 %v1812
  %v1974 = vunpack.c.l.b16 %v1813
  %v1975 = vunpack.c.h.b16 %v1813
  %v1976 = vunpack.c.l.b16 %v1814
  %v1977 = vunpack.c.h.b16 %v1814
  %v1978 = vunpack.c.l.b16 %v1815
  %v1979 = vunpack.c.h.b16 %v1815
  %v1980 = vunpack.c.l.b16 %v1816
  %v1981 = vunpack.c.h.b16 %v1816
  %v1982 = vunpack.c.l.b16 %v1817
  %v1983 = vunpack.c.h.b16 %v1817
  %v1984 = vunpack.c.l.b16 %v1818
  %v1985 = vunpack.c.h.b16 %v1818
  %v1986 = vunpack.c.l.b16 %v1819
  %v1987 = vunpack.c.h.b16 %v1819
  %v1988 = vunpack.c.l.b16 %v1820
  %v1989 = vunpack.c.h.b16 %v1820
  %v1990 = vunpack.c.l.b16 %v1821
  %v1991 = vunpack.c.h.b16 %v1821
  %v1992 = vunpack.c.l.b16 %v1822
  %v1993 = vunpack.c.h.b16 %v1822
  %v1994 = vunpack.c.l.b16 %v1823
  %v1995 = vunpack.c.h.b16 %v1823
  %v1996 = vunpack.c.l.b16 %v1824
  %v1997 = vunpack.c.h.b16 %v1824
  %v1998 = vunpack.c.l.b16 %v1825
  %v1999 = vunpack.c.h.b16 %v1825
  %v2000 = vunpack.c.l.b16 %v1826
  %v2001 = vunpack.c.h.b16 %v1826
  %v2002 = vunpack.c.l.b16 %v1827
  %v2003 = vunpack.c.h.b16 %v1827
  %v2004 = vunpack.c.l.b16 %v1828
  %v2005 = vunpack.c.h.b16 %v1828
  %v2006 = vunpack.c.l.b16 %v1829
  %v2007 = vunpack.c.h.b16 %v1829
  %v2008 = vunpack.c.l.b16 %v1830
  %v2009 = vunpack.c.h.b16 %v1830
  %v2010 = vunpack.c.l.b16 %v1831
  %v2011 = vunpack.c.h.b16 %v1831
  %v2012 = vunpack.c.l.b16 %v1832
  %v2013 = vunpack.c.h.b16 %v1832
  %v2014 = vunpack.c.l.b16 %v1833
  %v2015 = vunpack.c.h.b16 %v1833
  %v2016 = vunpack.c.l.b16 %v1834
  %v2017 = vunpack.c.h.b16 %v1834
  %v2018 = vunpack.c.l.b16 %v1835
  %v2019 = vunpack.c.h.b16 %v1835
  %v2020 = vunpack.c.l.b16 %v1836
  %v2021 = vunpack.c.h.b16 %v1836
  %v2022 = vunpack.c.l.b16 %v1837
  %v2023 = vunpack.c.h.b16 %v1837
  %v2024 = vunpack.c.l.b16 %v1838
  %v2025 = vunpack.c.h.b16 %v1838
  %v2026 = vunpack.c.l.b16 %v1839
  %v2027 = vunpack.c.h.b16 %v1839
  %v2028 = vunpack.c.l.b16 %v1840
  %v2029 = vunpack.c.h.b16 %v1840
  %v2030 = vunpack.c.l.b16 %v1841
  %v2031 = vunpack.c.h.b16 %v1841
  %v2032 = vunpack.c.l.b16 %v1842
  %v2033 = vunpack.c.h.b16 %v1842
  %v2034 = vunpack.c.l.b16 %v1843
  %v2035 = vunpack.c.h.b16 %v1843
  %v2036 = vunpack.c.l.b16 %v1844
  %v2037 = vunpack.c.h.b16 %v1844
  %v2038 = vunpack.c.l.b16 %v1845
  %v2039 = vunpack.c.h.b16 %v1845
  %v2040 = vunpack.c.l.b16 %v1846
  %v2041 = vunpack.c.h.b16 %v1846
  %v2042 = vunpack.c.l.b16 %v1847
  %v2043 = vunpack.c.h.b16 %v1847
  %v2044 = vunpack.c.l.b16 %v1848
  %v2045 = vunpack.c.h.b16 %v1848
  %v2046 = vunpack.c.l.b16 %v1849
  %v2047 = vunpack.c.h.b16 %v1849
  %v2048 = vunpack.c.l.b16 %v1850
  %v2049 = vunpack.c.h.b16 %v1850
  %v2050 = vunpack.c.l.b16 %v1851
  %v2051 = vunpack.c.h.b16 %v1851
  %v2052 = vpack.c.b16 %v1926, %v1924
  %v2053 = vpack.c.b16 %v1927, %v1925
  %v2054 = vpack.c.b16 %v1930, %v1928
  %v2055 = vpack.c.b16 %v1931, %v1929
  %v2056 = vpack.c.b16 %v1934, %v1932
  %v2057 = vpack.c.b16 %v1935, %v1933
  %v2058 = vpack.c.b16 %v1938, %v1936
  %v2059 = vpack.c.b16 %v1939, %v1937
  %v2060 = vpack.c.b16 %v1942, %v1940
  %v2061 = vpack.c.b16 %v1943, %v1941
  %v2062 = vpack.c.b16 %v1946, %v1944
  %v2063 = vpack.c.b16 %v1947, %v1945
  %v2064 = vpack.c.b16 %v1950, %v1948
  %v2065 = vpack.c.b16 %v1951, %v1949
  %v2066 = vpack.c.b16 %v1954, %v1952
  %v2067 = vpack.c.b16 %v1955, %v1953
  %v2068 = vpack.c.b16 %v1958, %v1956
  %v2069 = vpack.c.b16 %v1959, %v1957
  %v2070 = vpack.c.b16 %v1962, %v1960
  %v2071 = vpack.c.b16 %v1963, %v1961
  %v2072 = vpack.c.b16 %v1966, %v1964
  %v2073 = vpack.c.b16 %v1967, %v1965
  %v2074 = vpack.c.b16 %v1970, %v1968
  %v2075 = vpack.c.b16 %v1971, %v1969
  %v2076 = vpack.c.b16 %v1974, %v1972
  %v2077 = vpack.c.b16 %v1975, %v1973
  %v2078 = vpack.c.b16 %v1978, %v1976
  %v2079 = vpack.c.b16 %v1979, %v1977
  %v2080 = vpack.c.b16 %v1982, %v1980
  %v2081 = vpack.c.b16 %v1983, %v1981
  %v2082 = vpack.c.b16 %v1986, %v1984
  %v2083 = vpack.c.b16 %v1987, %v1985
  %v2084 = vpack.c.b16 %v1990, %v1988
  %v2085 = vpack.c.b16 %v1991, %v1989
  %v2086 = vpack.c.b16 %v1994, %v1992
  %v2087 = vpack.c.b16 %v1995, %v1993
  %v2088 = vpack.c.b16 %v1998, %v1996
  %v2089 = vpack.c.b16 %v1999, %v1997
  %v2090 = vpack.c.b16 %v2002, %v2000
  %v2091 = vpack.c.b16 %v2003, %v2001
  %v2092 = vpack.c.b16 %v2006, %v2004
  %v2093 = vpack.c.b16 %v2007, %v2005
  %v2094 = vpack.c.b16 %v2010, %v2008
  %v2095 = vpack.c.b16 %v2011, %v2009
  %v2096 = vpack.c.b16 %v2014, %v2012
  %v2097 = vpack.c.b16 %v2015, %v2013
  %v2098 = vpack.c.b16 %v2018, %v2016
  %v2099 = vpack.c.b16 %v2019, %v2017
  %v2100 = vpack.c.b16 %v2022, %v2020
  %v2101 = vpack.c.b16 %v2023, %v2021
  %v2102 = vpack.c.b16 %v2026, %v2024
  %v2103 = vpack.c.b16 %v2027, %v2025
  %v2104 = vpack.c.b16 %v2030, %v2028
  %v2105 = vpack.c.b16 %v2031, %v2029
  %v2106 = vpack.c.b16 %v2034, %v2032
  %v2107 = vpack.c.b16 %v2035, %v2033
  %v2108 = vpack.c.b16 %v2038, %v2036
  %v2109 = vpack.c.b16 %v2039, %v2037
  %v2110 = vpack.c.b16 %v2042, %v2040
  %v2111 = vpack.c.b16 %v2043, %v2041
  %v2112 = vpack.c.b16 %v2046, %v2044
  %v2113 = vpack.c.b16 %v2047, %v2045
  %v2114 = vpack.c.b16 %v2050, %v2048
  %v2115 = vpack.c.b16 %v2051, %v2049
  %2180 = vmatprep.subr.bf16.mxu0 %v2067
  %2181 = vmatpush1.bf16.msra.mxu0 %v2066
  %2182 = vmatprep.subr.bf16.mxu0 %v2065
  %2183 = vmatpush1.bf16.msra.mxu0 %v2064
  %2184 = vmatprep.subr.bf16.mxu0 %v2063
  %2185 = vmatpush1.bf16.msra.mxu0 %v2062
  %2186 = vmatprep.subr.bf16.mxu0 %v2061
  %2187 = vmatpush1.bf16.msra.mxu0 %v2060
  %2188 = vmatprep.subr.bf16.mxu0 %v2059
  %2189 = vmatpush1.bf16.msra.mxu0 %v2058
  %2190 = vmatprep.subr.bf16.mxu0 %v2057
  %2191 = vmatpush1.bf16.msra.mxu0 %v2056
  %2192 = vmatprep.subr.bf16.mxu0 %v2055
  %2193 = vmatpush1.bf16.msra.mxu0 %v2054
  %2194 = vmatprep.subr.bf16.mxu0 %v2053
  %2195 = vmatpush1.bf16.msra.mxu0 %v2052
  %2196 = vmatprep.subr.bf16.mxu0 %v2083
  %2197 = vmatpush2.bf16.msra.mxu0 %v2082
  %2198 = vmatprep.subr.bf16.mxu0 %v2081
  %2199 = vmatpush2.bf16.msra.mxu0 %v2080
  %2200 = vmatprep.subr.bf16.mxu0 %v2079
  %2201 = vmatpush2.bf16.msra.mxu0 %v2078
  %2202 = vmatprep.subr.bf16.mxu0 %v2077
  %2203 = vmatpush2.bf16.msra.mxu0 %v2076
  %2204 = vmatprep.subr.bf16.mxu0 %v2075
  %2205 = vmatpush2.bf16.msra.mxu0 %v2074
  %2206 = vmatprep.subr.bf16.mxu0 %v2073
  %2207 = vmatpush2.bf16.msra.mxu0 %v2072
  %2208 = vmatprep.subr.bf16.mxu0 %v2071
  %2209 = vmatpush2.bf16.msra.mxu0 %v2070
  %2210 = vmatprep.subr.bf16.mxu0 %v2069
  %2211 = vmatpush2.bf16.msra.mxu0 %v2068
  %2212 = vmatprep.mubr.bf16.mxu0 %v1785
  %2213 = vmatmul.mubr.bf16.gmra.mxu0 %v1784
  %v2214 = vpop.f32.mrf.mxu0
  %v2215 = vadd.f32 %v1855, %v2214
  %v2216 = vpop.f32.mrf.mxu0
  %v2217 = vadd.f32 %v1859, %v2216
  %v2218 = vpop.f32.mrf.mxu0
  %v2219 = vpop.f32.mrf.mxu0
  %2220 = vdwg.mxu0
  %2221 = vmatprep.subr.bf16.mxu0 %v2099
  %2222 = vmatpush1.bf16.msra.mxu0 %v2098
  %2223 = vmatprep.subr.bf16.mxu0 %v2097
  %2224 = vmatpush1.bf16.msra.mxu0 %v2096
  %2225 = vmatprep.subr.bf16.mxu0 %v2095
  %2226 = vmatpush1.bf16.msra.mxu0 %v2094
  %2227 = vmatprep.subr.bf16.mxu0 %v2093
  %2228 = vmatpush1.bf16.msra.mxu0 %v2092
  %2229 = vmatprep.subr.bf16.mxu0 %v2091
  %2230 = vmatpush1.bf16.msra.mxu0 %v2090
  %2231 = vmatprep.subr.bf16.mxu0 %v2089
  %2232 = vmatpush1.bf16.msra.mxu0 %v2088
  %2233 = vmatprep.subr.bf16.mxu0 %v2087
  %2234 = vmatpush1.bf16.msra.mxu0 %v2086
  %2235 = vmatprep.subr.bf16.mxu0 %v2085
  %2236 = vmatpush1.bf16.msra.mxu0 %v2084
  %2237 = vmatprep.subr.bf16.mxu0 %v2115
  %2238 = vmatpush2.bf16.msra.mxu0 %v2114
  %2239 = vmatprep.subr.bf16.mxu0 %v2113
  %2240 = vmatpush2.bf16.msra.mxu0 %v2112
  %2241 = vmatprep.subr.bf16.mxu0 %v2111
  %2242 = vmatpush2.bf16.msra.mxu0 %v2110
  %2243 = vmatprep.subr.bf16.mxu0 %v2109
  %2244 = vmatpush2.bf16.msra.mxu0 %v2108
  %2245 = vmatprep.subr.bf16.mxu0 %v2107
  %2246 = vmatpush2.bf16.msra.mxu0 %v2106
  %2247 = vmatprep.subr.bf16.mxu0 %v2105
  %2248 = vmatpush2.bf16.msra.mxu0 %v2104
  %2249 = vmatprep.subr.bf16.mxu0 %v2103
  %2250 = vmatpush2.bf16.msra.mxu0 %v2102
  %2251 = vmatprep.subr.bf16.mxu0 %v2101
  %2252 = vmatpush2.bf16.msra.mxu0 %v2100
  %2253 = vmatprep.mubr.bf16.mxu0 %v1787
  %2254 = vmatmul.mubr.bf16.gmra.mxu0 %v1786
  %v2255 = vpop.f32.mrf.mxu0
  %v2256 = vadd.f32 %v2215, %v2255
  %v2257 = vpop.f32.mrf.mxu0
  %v2258 = vadd.f32 %v2217, %v2257
  %v2259 = vpop.f32.mrf.mxu0
  %v2260 = vpop.f32.mrf.mxu0
  %2261 = vdwg.mxu0
  %v2262 = vmul.f32 %v2256, %v2256
  %v2263 = vmul.f32 %v2258, %v2258
  %v2264 = vmul.f32 %v2256, %v2262
  %v2265 = vmul.f32 %v2258, %v2263
  %v2266 = vmul.f32 %v2264, 0.044715
  %v2267 = vmul.f32 %v2265, 0.044715
  %v2268 = vadd.f32 %v2256, %v2266
  %v2269 = vadd.f32 %v2258, %v2267
  %v2270 = vmul.f32 %v2268, 0.7978846
  %v2271 = vmul.f32 %v2269, 0.7978846
  %v2272 = vtanh.pop %v2270
  %v2273 = vtanh.pop %v2271
  %v2274 = vadd.f32 %v2272, 1.0
  %v2275 = vadd.f32 %v2273, 1.0
  %v2276 = vmul.f32 %v2274, 0.5
  %v2277 = vmul.f32 %v2275, 0.5
  %v2278 = vmul.f32 %v2256, %v2276
  %v2279 = vmul.f32 %v2258, %v2277
  %v2280 = vpack.c.bf16 %v2278, %v2278
  %v2281 = vpack.c.bf16 %v2279, %v2279
  %v2282 = vld [vmem:[%s3] sm:$0xf]
  %v2283 = vld [vmem:[%s3 + $0x4] sm:$0xf]
  %v2284 = vld [vmem:[%s3 + $0x8] sm:$0xf]
  %v2285 = vld [vmem:[%s3 + $0xc] sm:$0xf]
  %v2286 = vld [vmem:[%s3 + $0x10] sm:$0xf]
  %v2287 = vld [vmem:[%s3 + $0x14] sm:$0xf]
  %v2288 = vld [vmem:[%s3 + $0x18] sm:$0xf]
  %v2289 = vld [vmem:[%s3 + $0x1c] sm:$0xf]
  %v2290 = vld [vmem:[%s3 + $0x20] sm:$0xf]
  %v2291 = vld [vmem:[%s3 + $0x24] sm:$0xf]
  %v2292 = vld [vmem:[%s3 + $0x28] sm:$0xf]
  %v2293 = vld [vmem:[%s3 + $0x2c] sm:$0xf]
  %v2294 = vld [vmem:[%s3 + $0x30] sm:$0xf]
  %v2295 = vld [vmem:[%s3 + $0x34] sm:$0xf]
  %v2296 = vld [vmem:[%s3 + $0x38] sm:$0xf]
  %v2297 = vld [vmem:[%s3 + $0x3c] sm:$0xf]
  %v2298 = vld [vmem:[%s3 + $0x40] sm:$0xf]
  %v2299 = vld [vmem:[%s3 + $0x44] sm:$0xf]
  %v2300 = vld [vmem:[%s3 + $0x48] sm:$0xf]
  %v2301 = vld [vmem:[%s3 + $0x4c] sm:$0xf]
  %v2302 = vld [vmem:[%s3 + $0x50] sm:$0xf]
  %v2303 = vld [vmem:[%s3 + $0x54] sm:$0xf]
  %v2304 = vld [vmem:[%s3 + $0x58] sm:$0xf]
  %v2305 = vld [vmem:[%s3 + $0x5c] sm:$0xf]
  %v2306 = vld [vmem:[%s3 + $0x60] sm:$0xf]
  %v2307 = vld [vmem:[%s3 + $0x64] sm:$0xf]
  %v2308 = vld [vmem:[%s3 + $0x68] sm:$0xf]
  %v2309 = vld [vmem:[%s3 + $0x6c] sm:$0xf]
  %v2310 = vld [vmem:[%s3 + $0x70] sm:$0xf]
  %v2311 = vld [vmem:[%s3 + $0x74] sm:$0xf]
  %v2312 = vld [vmem:[%s3 + $0x78] sm:$0xf]
  %v2313 = vld [vmem:[%s3 + $0x7c] sm:$0xf]
  %v2314 = vlaneseq
  %v2315 = vshrl.u32 %v2314, 7
  %v2316 = vsub.s32 2, %v2315
  %v2317 = vrot.slane %v27, %v2316
  %v2350 = vunpack.c.l.b16 %v2282
  %v2351 = vunpack.c.l.b16 %v2283
  %v2352 = vunpack.c.l.b16 %v2284
  %v2353 = vunpack.c.l.b16 %v2285
  %v2354 = vunpack.c.l.b16 %v2286
  %v2355 = vunpack.c.l.b16 %v2287
  %v2356 = vunpack.c.l.b16 %v2288
  %v2357 = vunpack.c.l.b16 %v2289
  %v2358 = vunpack.c.l.b16 %v2290
  %v2359 = vunpack.c.l.b16 %v2291
  %v2360 = vunpack.c.l.b16 %v2292
  %v2361 = vunpack.c.l.b16 %v2293
  %v2362 = vunpack.c.l.b16 %v2294
  %v2363 = vunpack.c.l.b16 %v2295
  %v2364 = vunpack.c.l.b16 %v2296
  %v2365 = vunpack.c.l.b16 %v2297
  %v2366 = vunpack.c.l.b16 %v2298
  %v2367 = vunpack.c.l.b16 %v2299
  %v2368 = vunpack.c.l.b16 %v2300
  %v2369 = vunpack.c.l.b16 %v2301
  %v2370 = vunpack.c.l.b16 %v2302
  %v2371 = vunpack.c.l.b16 %v2303
  %v2372 = vunpack.c.l.b16 %v2304
  %v2373 = vunpack.c.l.b16 %v2305
  %v2374 = vunpack.c.l.b16 %v2306
  %v2375 = vunpack.c.l.b16 %v2307
  %v2376 = vunpack.c.l.b16 %v2308
  %v2377 = vunpack.c.l.b16 %v2309
  %v2378 = vunpack.c.l.b16 %v2310
  %v2379 = vunpack.c.l.b16 %v2311
  %v2380 = vunpack.c.l.b16 %v2312
  %v2381 = vunpack.c.l.b16 %v2313
  %v2382 = vpack.c.b16 %v2351, %v2350
  %v2383 = vpack.c.b16 %v2353, %v2352
  %v2384 = vpack.c.b16 %v2355, %v2354
  %v2385 = vpack.c.b16 %v2357, %v2356
  %v2386 = vpack.c.b16 %v2359, %v2358
  %v2387 = vpack.c.b16 %v2361, %v2360
  %v2388 = vpack.c.b16 %v2363, %v2362
  %v2389 = vpack.c.b16 %v2365, %v2364
  %v2390 = vpack.c.b16 %v2367, %v2366
  %v2391 = vpack.c.b16 %v2369, %v2368
  %v2392 = vpack.c.b16 %v2371, %v2370
  %v2393 = vpack.c.b16 %v2373, %v2372
  %v2394 = vpack.c.b16 %v2375, %v2374
  %v2395 = vpack.c.b16 %v2377, %v2376
  %v2396 = vpack.c.b16 %v2379, %v2378
  %v2397 = vpack.c.b16 %v2381, %v2380
  %2414 = vmatprep.subr.bf16.mxu0 0
  %2415 = vmatpush1.bf16.msra.mxu0 %v2389
  %2416 = vmatprep.subr.bf16.mxu0 0
  %2417 = vmatpush1.bf16.msra.mxu0 %v2388
  %2418 = vmatprep.subr.bf16.mxu0 0
  %2419 = vmatpush1.bf16.msra.mxu0 %v2387
  %2420 = vmatprep.subr.bf16.mxu0 0
  %2421 = vmatpush1.bf16.msra.mxu0 %v2386
  %2422 = vmatprep.subr.bf16.mxu0 0
  %2423 = vmatpush1.bf16.msra.mxu0 %v2385
  %2424 = vmatprep.subr.bf16.mxu0 0
  %2425 = vmatpush1.bf16.msra.mxu0 %v2384
  %2426 = vmatprep.subr.bf16.mxu0 0
  %2427 = vmatpush1.bf16.msra.mxu0 %v2383
  %2428 = vmatprep.subr.bf16.mxu0 0
  %2429 = vmatpush1.bf16.msra.mxu0 %v2382
  %2430 = vmatprep.subr.bf16.mxu0 0
  %2431 = vmatpush2.bf16.msra.mxu0 %v2397
  %2432 = vmatprep.subr.bf16.mxu0 0
  %2433 = vmatpush2.bf16.msra.mxu0 %v2396
  %2434 = vmatprep.subr.bf16.mxu0 0
  %2435 = vmatpush2.bf16.msra.mxu0 %v2395
  %2436 = vmatprep.subr.bf16.mxu0 0
  %2437 = vmatpush2.bf16.msra.mxu0 %v2394
  %2438 = vmatprep.subr.bf16.mxu0 0
  %2439 = vmatpush2.bf16.msra.mxu0 %v2393
  %2440 = vmatprep.subr.bf16.mxu0 0
  %2441 = vmatpush2.bf16.msra.mxu0 %v2392
  %2442 = vmatprep.subr.bf16.mxu0 0
  %2443 = vmatpush2.bf16.msra.mxu0 %v2391
  %2444 = vmatprep.subr.bf16.mxu0 0
  %2445 = vmatpush2.bf16.msra.mxu0 %v2390
  %2446 = vmatprep.mubr.bf16.mxu0 %v2281
  %2447 = vmatmul.mubr.bf16.gmra.mxu0 %v2280
  %v2448 = vpop.f32.mrf.mxu0
  %v2449 = vadd.f32 %v2317, %v2448
  %v2450 = vpop.f32.mrf.mxu0
  %v2451 = vpop.f32.mrf.mxu0
  %v2452 = vpop.f32.mrf.mxu0
  %2453 = vdwg.mxu0
  %v2454 = vmul.f32 %v2449, %v2449
  %v2455 = vmul.f32 %v2449, %v2454
  %v2456 = vmul.f32 %v2455, 0.044715
  %v2457 = vadd.f32 %v2449, %v2456
  %v2458 = vmul.f32 %v2457, 0.7978846
  %v2459 = vtanh.pop %v2458
  %v2460 = vadd.f32 %v2459, 1.0
  %v2461 = vmul.f32 %v2460, 0.5
  %v2462 = vmul.f32 %v2449, %v2461
  %v2463 = vpack.c.bf16 %v2462, %v2462
  %v2464 = vld [vmem:[%s4] sm:$0xf]
  %v2465 = vld [vmem:[%s4 + $0x4] sm:$0xf]
  %v2466 = vld [vmem:[%s4 + $0x8] sm:$0xf]
  %v2467 = vld [vmem:[%s4 + $0xc] sm:$0xf]
  %v2468 = vld [vmem:[%s4 + $0x10] sm:$0xf]
  %v2469 = vld [vmem:[%s4 + $0x14] sm:$0xf]
  %v2470 = vld [vmem:[%s4 + $0x18] sm:$0xf]
  %v2471 = vld [vmem:[%s4 + $0x1c] sm:$0xf]
  %v2472 = vld [vmem:[%s4 + $0x20] sm:$0xf]
  %v2473 = vld [vmem:[%s4 + $0x24] sm:$0xf]
  %v2474 = vld [vmem:[%s4 + $0x28] sm:$0xf]
  %v2475 = vld [vmem:[%s4 + $0x2c] sm:$0xf]
  %v2476 = vld [vmem:[%s4 + $0x30] sm:$0xf]
  %v2477 = vld [vmem:[%s4 + $0x34] sm:$0xf]
  %v2478 = vld [vmem:[%s4 + $0x38] sm:$0xf]
  %v2479 = vld [vmem:[%s4 + $0x3c] sm:$0xf]
  %v2480 = vlaneseq
  %v2481 = vshrl.u32 %v2480, 7
  %v2482 = vsub.s32 3, %v2481
  %v2483 = vrot.slane %v27, %v2482
  %v2500 = vunpack.c.l.b16 %v2464
  %v2501 = vunpack.c.l.b16 %v2465
  %v2502 = vunpack.c.l.b16 %v2466
  %v2503 = vunpack.c.l.b16 %v2467
  %v2504 = vunpack.c.l.b16 %v2468
  %v2505 = vunpack.c.l.b16 %v2469
  %v2506 = vunpack.c.l.b16 %v2470
  %v2507 = vunpack.c.l.b16 %v2471
  %v2508 = vunpack.c.l.b16 %v2472
  %v2509 = vunpack.c.l.b16 %v2473
  %v2510 = vunpack.c.l.b16 %v2474
  %v2511 = vunpack.c.l.b16 %v2475
  %v2512 = vunpack.c.l.b16 %v2476
  %v2513 = vunpack.c.l.b16 %v2477
  %v2514 = vunpack.c.l.b16 %v2478
  %v2515 = vunpack.c.l.b16 %v2479
  %v2516 = vpack.c.b16 %v2501, %v2500
  %v2517 = vpack.c.b16 %v2503, %v2502
  %v2518 = vpack.c.b16 %v2505, %v2504
  %v2519 = vpack.c.b16 %v2507, %v2506
  %v2520 = vpack.c.b16 %v2509, %v2508
  %v2521 = vpack.c.b16 %v2511, %v2510
  %v2522 = vpack.c.b16 %v2513, %v2512
  %v2523 = vpack.c.b16 %v2515, %v2514
  %2532 = vmatprep.subr.bf16.mxu0 0
  %2533 = vmatpush1.bf16.msra.mxu0 %v2523
  %2534 = vmatprep.subr.bf16.mxu0 0
  %2535 = vmatpush1.bf16.msra.mxu0 %v2522
  %2536 = vmatprep.subr.bf16.mxu0 0
  %2537 = vmatpush1.bf16.msra.mxu0 %v2521
  %2538 = vmatprep.subr.bf16.mxu0 0
  %2539 = vmatpush1.bf16.msra.mxu0 %v2520
  %2540 = vmatprep.subr.bf16.mxu0 0
  %2541 = vmatpush1.bf16.msra.mxu0 %v2519
  %2542 = vmatprep.subr.bf16.mxu0 0
  %2543 = vmatpush1.bf16.msra.mxu0 %v2518
  %2544 = vmatprep.subr.bf16.mxu0 0
  %2545 = vmatpush1.bf16.msra.mxu0 %v2517
  %2546 = vmatprep.subr.bf16.mxu0 0
  %2547 = vmatpush1.bf16.msra.mxu0 %v2516
  %2548 = vmatprep.subr.bf16.mxu0 0
  %2549 = vmatpush2.bf16.msra.mxu0 0
  %2550 = vmatprep.subr.bf16.mxu0 0
  %2551 = vmatpush2.bf16.msra.mxu0 0
  %2552 = vmatprep.subr.bf16.mxu0 0
  %2553 = vmatpush2.bf16.msra.mxu0 0
  %2554 = vmatprep.subr.bf16.mxu0 0
  %2555 = vmatpush2.bf16.msra.mxu0 0
  %2556 = vmatprep.subr.bf16.mxu0 0
  %2557 = vmatpush2.bf16.msra.mxu0 0
  %2558 = vmatprep.subr.bf16.mxu0 0
  %2559 = vmatpush2.bf16.msra.mxu0 0
  %2560 = vmatprep.subr.bf16.mxu0 0
  %2561 = vmatpush2.bf16.msra.mxu0 0
  %2562 = vmatprep.subr.bf16.mxu0 0
  %2563 = vmatpush2.bf16.msra.mxu0 0
  %2564 = vmatprep.mubr.bf16.mxu0 0
  %2565 = vmatmul.mubr.bf16.gmra.mxu0 %v2463
  %v2566 = vpop.f32.mrf.mxu0
  %v2567 = vadd.f32 %v2483, %v2566
  %v2568 = vpop.f32.mrf.mxu0
  %v2569 = vpop.f32.mrf.mxu0
  %v2570 = vpop.f32.mrf.mxu0
  %2571 = vdwg.mxu0
  %v2572 = vmul.f32 %v2567, %v2567
  %v2573 = vmul.f32 %v2567, %v2572
  %v2574 = vmul.f32 %v2573, 0.044715
  %v2575 = vadd.f32 %v2567, %v2574
  %v2576 = vmul.f32 %v2575, 0.7978846
  %v2577 = vtanh.pop %v2576
  %v2578 = vadd.f32 %v2577, 1.0
  %v2579 = vmul.f32 %v2578, 0.5
  %v2580 = vmul.f32 %v2567, %v2579
  %v2581 = vpack.c.bf16 %v2580, %v2580
  %v2582 = vld [vmem:[%s5] sm:$0xf]
  %v2583 = vld [vmem:[%s5 + $0x4] sm:$0xf]
  %v2584 = vld [vmem:[%s5 + $0x8] sm:$0xf]
  %v2585 = vld [vmem:[%s5 + $0xc] sm:$0xf]
  %v2586 = vld [vmem:[%s5 + $0x10] sm:$0xf]
  %v2587 = vld [vmem:[%s5 + $0x14] sm:$0xf]
  %v2588 = vld [vmem:[%s5 + $0x18] sm:$0xf]
  %v2589 = vld [vmem:[%s5 + $0x1c] sm:$0xf]
  %v2590 = vlaneseq
  %v2591 = vshrl.u32 %v2590, 7
  %v2592 = vsub.s32 4, %v2591
  %v2593 = vrot.slane %v27, %v2592
  %v2602 = vunpack.c.l.b16 %v2582
  %v2603 = vunpack.c.l.b16 %v2583
  %v2604 = vunpack.c.l.b16 %v2584
  %v2605 = vunpack.c.l.b16 %v2585
  %v2606 = vunpack.c.l.b16 %v2586
  %v2607 = vunpack.c.l.b16 %v2587
  %v2608 = vunpack.c.l.b16 %v2588
  %v2609 = vunpack.c.l.b16 %v2589
  %v2610 = vpack.c.b16 %v2603, %v2602
  %v2611 = vpack.c.b16 %v2605, %v2604
  %v2612 = vpack.c.b16 %v2607, %v2606
  %v2613 = vpack.c.b16 %v2609, %v2608
  %vm2618 = vcmask 523264
  %v2620 = vsel %vm2618, %v2581, 0
  %2622 = vmatprep.subr.bf16.mxu0 0
  %2623 = vmatpush1.bf16.msra.mxu0 0
  %2624 = vmatprep.subr.bf16.mxu0 0
  %2625 = vmatpush1.bf16.msra.mxu0 0
  %2626 = vmatprep.subr.bf16.mxu0 0
  %2627 = vmatpush1.bf16.msra.mxu0 0
  %2628 = vmatprep.subr.bf16.mxu0 0
  %2629 = vmatpush1.bf16.msra.mxu0 0
  %2630 = vmatprep.subr.bf16.mxu0 0
  %2631 = vmatpush1.bf16.msra.mxu0 %v2613
  %2632 = vmatprep.subr.bf16.mxu0 0
  %2633 = vmatpush1.bf16.msra.mxu0 %v2612
  %2634 = vmatprep.subr.bf16.mxu0 0
  %2635 = vmatpush1.bf16.msra.mxu0 %v2611
  %2636 = vmatprep.subr.bf16.mxu0 0
  %2637 = vmatpush1.bf16.msra.mxu0 %v2610
  %2638 = vmatprep.subr.bf16.mxu0 0
  %2639 = vmatpush2.bf16.msra.mxu0 0
  %2640 = vmatprep.subr.bf16.mxu0 0
  %2641 = vmatpush2.bf16.msra.mxu0 0
  %2642 = vmatprep.subr.bf16.mxu0 0
  %2643 = vmatpush2.bf16.msra.mxu0 0
  %2644 = vmatprep.subr.bf16.mxu0 0
  %2645 = vmatpush2.bf16.msra.mxu0 0
  %2646 = vmatprep.subr.bf16.mxu0 0
  %2647 = vmatpush2.bf16.msra.mxu0 0
  %2648 = vmatprep.subr.bf16.mxu0 0
  %2649 = vmatpush2.bf16.msra.mxu0 0
  %2650 = vmatprep.subr.bf16.mxu0 0
  %2651 = vmatpush2.bf16.msra.mxu0 0
  %2652 = vmatprep.subr.bf16.mxu0 0
  %2653 = vmatpush2.bf16.msra.mxu0 0
  %2654 = vmatprep.mubr.bf16.mxu0 0
  %2655 = vmatmul.mubr.bf16.gmra.mxu0 %v2620
  %v2656 = vpop.f32.mrf.mxu0
  %v2657 = vadd.f32 %v2593, %v2656
  %v2658 = vpop.f32.mrf.mxu0
  %v2659 = vpop.f32.mrf.mxu0
  %v2660 = vpop.f32.mrf.mxu0
  %2661 = vdwg.mxu0
  %v2662 = vmul.f32 %v2657, %v2657
  %v2663 = vmul.f32 %v2657, %v2662
  %v2664 = vmul.f32 %v2663, 0.044715
  %v2665 = vadd.f32 %v2657, %v2664
  %v2666 = vmul.f32 %v2665, 0.7978846
  %v2667 = vtanh.pop %v2666
  %v2668 = vadd.f32 %v2667, 1.0
  %v2669 = vmul.f32 %v2668, 0.5
  %v2670 = vmul.f32 %v2657, %v2669
  %v2671 = vlaneseq
  %v2672 = vshrl.u32 %v2671, 7
  %v2673 = vsub.s32 6, %v2672
  %v2674 = vrot.slane %v27, %v2673
  %v2675 = vmul.f32 %v2670, %v2674
  %vm2676 = vcmask 261120
  %v2677 = vsel %vm2676, %v2675, 0.0
  %2678 = vadd.xlane.f32.xlu0 %v2677
  %v2679 = vpop.xlane.xlu0 %2678
  %v2680 = vlaneseq
  %v2681 = vshrl.u32 %v2680, 7
  %v2682 = vsub.s32 5, %v2681
  %v2683 = vrot.slane %v27, %v2682
  %v2684 = vadd.f32 %v2679, %v2683
  %v2685 = vxor.u32 %v2684, 2147483648
  %v2686 = vmul.f32 %v2685, 1.442695
  %v2687 = vpow.pop %v2686
  %v2688 = vadd.f32 %v2687, 1.0
  %v2689 = vrcp.pop %v2688
  %v2690 = vmul.f32 1.0, %v2689
  %vm2691 = vcmask 7168
  %2692 = vst.msk [vmem:[%s7] sm:$0xff] %vm2691, %v2690
  // Predicated region
  $region30: #{discriminator_forward.1} parent=0 // pred_check
    _
  $region31: #{discriminator_forward.1} parent=0 // pred_check_branch
    %2694 = sbr.rel (0) target = $region33
  $region32: #{discriminator_forward.1} parent=0 // pred_region
    _
  $region33: #{discriminator_forward.1} parent=0 // pred_fallthru
    _
  // Predicated region
  $region34: #{discriminator_forward.1} parent=0 // pred_check
    _
  $region35: #{discriminator_forward.1} parent=0 // pred_check_branch
    %2696 = sbr.rel (0) target = $region37
  $region36: #{discriminator_forward.1} parent=0 // pred_region
    _
  $region37: #{discriminator_forward.1} parent=0 // pred_fallthru
    _

</llo_original>
